<compile_context>
chip_gen: v5e
topology: v5e:2x2
jax: 0.10.0
libtpu: 0.0.40
codegen_flags: <defaults>
</compile_context>

<pallas_src>
import jax
import jax.numpy as jnp
from jax.experimental import pallas as pl
from jax.experimental.pallas import tpu as pltpu


# ----------------------------------------------------------------------------
# Kernel
# ----------------------------------------------------------------------------
def row_attention_kernel(x_ref, w1_ref, w2_ref, o_ref):
    # x_ref block: (BT, C, H, TW); W tile (TW) sits on the lane axis, H on the
    # sublane axis, so the H-pooling is a sublane (XLU) reduction.
    BT, C, H, TW = x_ref.shape
    Cr = w1_ref.shape[0]

    w1 = w1_ref[...].astype(jnp.float32)          # (Cr, C)
    w2 = w2_ref[...].astype(jnp.float32)          # (C, Cr)
    inv_h = 1.0 / H

    def mlp(p):                                   # p: (C, TW) fp32 -> (C, TW) fp32
        h = jnp.maximum(jnp.dot(w1, p, preferred_element_type=jnp.float32), 0.0)
        if Cr <= 4:
            # K=Cr contraction is far too shallow for the MXU -> VPU mul-adds.
            out = w2[:, 0:1] * h[0:1, :]
            for k in range(1, Cr):
                out = out + w2[:, k:k + 1] * h[k:k + 1, :]
            return out
        return jnp.dot(w2, h, preferred_element_type=jnp.float32)

    # Static unroll over the (small) batch tile; keeps every matmul a plain
    # 2-D MXU contraction (no batched-dot / transpose lowering corners).
    for b in range(BT):
        x_b = x_ref[b]                                       # (C, H, TW)
        # Pooling over H from a single block load (sum in fp32; max is exact
        # in the native dtype).  A fully fused single-pass fori_loop reduction
        # only matters if vld/VALU co-bind with bf16 on v7x.
        sum_p = jnp.sum(x_b, axis=1, dtype=jnp.float32)      # (C, TW)
        max_p = jnp.max(x_b, axis=1).astype(jnp.float32)     # (C, TW)

        logits = mlp(sum_p * inv_h) + mlp(max_p)             # (C, TW) fp32
        gate = jax.nn.sigmoid(logits)

        # Multiply in the input dtype and store (bf16 inputs stay bf16 -> half
        # the HBM write bytes; fp32 inputs are bit-exact vs. the reference).
        o_ref[b] = (gate.astype(x_b.dtype)[:, None, :] * x_b).astype(o_ref.dtype)


# ----------------------------------------------------------------------------
# Tiling / VMEM planning
# ----------------------------------------------------------------------------
def _vmem_capacity_bytes():
    """Physical per-TensorCore VMEM; conservative 64 MiB (v7x) fallback."""
    try:
        info = pltpu.get_tpu_info()
        for name in ("vmem_capacity_bytes", "vmem_bytes"):
            cap = getattr(info, name, None)
            if cap:
                return int(cap)
    except Exception:
        pass
    return 64 * 1024 * 1024


def _plan_w_tile(C, H, W, itemsize, block_budget):
    """Largest lane-dense (multiple-of-128) divisor of W fitting the budget."""
    if W % 128 != 0:
        return W                       # caller made sure the full-W block fits
    col_bytes = C * H * itemsize
    fitting = [d for d in range(128, W + 1, 128)
               if W % d == 0 and d * col_bytes <= block_budget]
    # 128-lane floor: H is the pooled axis so it is not tiled here; extremely
    # large C*H would need an H-accumulator pass to shrink further.
    return max(fitting) if fitting else 128


def _plan_b_tile(B, C, H, w_tile, n_w, itemsize, block_budget):
    """Fold batch elements into a block, keeping >=2 balanced grid steps
    (v7x has 2 TensorCores; single-step grids idle one of them)."""
    blk_bytes = C * H * w_tile * itemsize
    for d in range(B, 0, -1):
        if B % d != 0 or d * blk_bytes > block_budget:
            continue
        if (B // d) * n_w >= 2 or B * n_w < 2:
            return d
    return 1


# ----------------------------------------------------------------------------
# Wrapper
# ----------------------------------------------------------------------------
def row_attention(x, w1, w2, *, b_tile=None, w_tile=None):
    """x: (B, C, H, W) NCHW; w1: (C//r, C); w2: (C, C//r)."""
    B, C, H, W0 = x.shape
    Cr = w1.shape[0]
    assert w1.shape == (Cr, C) and w2.shape == (C, Cr)
    itemsize = x.dtype.itemsize

    vmem_cap = _vmem_capacity_bytes()
    # Per-block budget ~ capacity/10 (=12.8 MiB on 128 MiB v5e/v6e, =6.4 MiB on
    # 64 MiB v7x).  Real VMEM use is ~2x(in block) + 2x(out block) (double
    # buffering) + pooled fp32 intermediates, so this leaves comfortable slack.
    block_budget = vmem_cap // 10

    # Keep W lane-dense: if W % 128 != 0 and a full-W block would blow the
    # budget, pad W up to a multiple of 128 (output sliced back below) so
    # stores stay unmasked and blocks stay within budget.
    W = W0
    if W % 128 != 0 and C * H * W * itemsize > block_budget:
        W = pl.cdiv(W0, 128) * 128
        x = jnp.pad(x, ((0, 0), (0, 0), (0, 0), (0, W - W0)))

    if w_tile is None:
        w_tile = _plan_w_tile(C, H, W, itemsize, block_budget)
    assert W % w_tile == 0 and (w_tile == W or w_tile % 128 == 0), (W, w_tile)
    n_w = W // w_tile

    if b_tile is None:
        b_tile = _plan_b_tile(B, C, H, w_tile, n_w, itemsize, block_budget)
    assert B % b_tile == 0
    n_b = B // b_tile

    # Advisory cost: x read+written once; weights DMA'd once (constant block
    # index across the grid).
    cost = pl.CostEstimate(
        flops=int(8 * B * W0 * C * Cr + 3 * B * C * H * W0),
        transcendentals=int(B * C * W0),
        bytes_accessed=int(2 * B * C * H * W0 * itemsize
                           + (w1.size + w2.size) * w1.dtype.itemsize),
    )

    # 64 MiB is fine on 128 MiB parts (v5e/v6e); on 64 MiB v7x cap at ~70% of
    # physical VMEM (~44.8 MiB) to leave Mosaic scratch/semaphore headroom.
    vmem_limit = min(64 * 1024 * 1024, int(0.70 * vmem_cap))

    out = pl.pallas_call(
        row_attention_kernel,
        out_shape=jax.ShapeDtypeStruct((B, C, H, W), x.dtype),
        grid_spec=pltpu.PrefetchScalarGridSpec(
            num_scalar_prefetch=0,
            grid=(n_b, n_w),
            in_specs=[
                pl.BlockSpec((b_tile, C, H, w_tile), lambda b, w: (b, 0, 0, w)),
                pl.BlockSpec((Cr, C), lambda b, w: (0, 0)),
                pl.BlockSpec((C, Cr), lambda b, w: (0, 0)),
            ],
            out_specs=pl.BlockSpec((b_tile, C, H, w_tile),
                                   lambda b, w: (b, 0, 0, w)),
        ),
        compiler_params=pltpu.CompilerParams(
            dimension_semantics=("parallel", "parallel"),
            vmem_limit_bytes=vmem_limit,
        ),
        cost_estimate=cost,
    )(x, w1, w2)

    if W != W0:
        out = out[..., :W0]
    return out


# ----------------------------------------------------------------------------
# Pure-JAX reference (matches the PyTorch forward exactly)
# ----------------------------------------------------------------------------
def row_attention_ref(x, w1, w2):
    avg = jnp.mean(x, axis=2, keepdims=True)              # (B, C, 1, W)
    mx = jnp.max(x, axis=2, keepdims=True)                # (B, C, 1, W)

    def mlp(p):
        h = jnp.einsum('oc,bchw->bohw', w1, p)            # 1x1 conv, no bias
        h = jnp.maximum(h, 0.0)
        return jnp.einsum('co,bohw->bchw', w2, h)

    out = mlp(avg) + mlp(mx)
    return jax.nn.sigmoid(out) * x


if __name__ == "__main__":
    B, C, H, W = 2, 32, 16, 256
    reduction = 16
    Cr = C // reduction  # 2

    key = jax.random.PRNGKey(0)
    kx, k1, k2 = jax.random.split(key, 3)

    x = jax.random.normal(kx, (B, C, H, W), dtype=jnp.float32)
    # Deterministic Conv2d(1x1, bias=False) weights, squeezed to 2-D matmuls.
    w1 = jax.random.normal(k1, (Cr, C), dtype=jnp.float32) * (1.0 / jnp.sqrt(C))
    w2 = jax.random.normal(k2, (C, Cr), dtype=jnp.float32) * (1.0 / jnp.sqrt(Cr))

    ref = row_attention_ref(x, w1, w2)

    # Auto-planned tiling (full-W lane-dense blocks, grid=(B, 1) -> 2 balanced
    # parallel steps so both v7x TensorCores are used).
    out = jax.block_until_ready(row_attention(x, w1, w2))
    assert out.shape == (B, C, H, W)
    assert jnp.allclose(out, ref, atol=1e-5, rtol=1e-5), (
        float(jnp.max(jnp.abs(out - ref))))

    # Explicit batched-block + multi-W-tile path: block=(2, C, H, 128),
    # grid=(1, 2) — exercises the in-kernel batch unroll.
    out2 = jax.block_until_ready(row_attention(x, w1, w2, b_tile=2, w_tile=128))
    assert jnp.allclose(out2, ref, atol=1e-5, rtol=1e-5), (
        float(jnp.max(jnp.abs(out2 - ref))))

    print("KERNEL_OK")
</pallas_src>

<mosaic_0001>
module attributes {stable_mosaic.version = 11 : i64} {
  func.func @row_attention_kernel(%arg0: i32, %arg1: i32, %arg2: memref<1x32x16x256xf32, #tpu.memory_space<vmem>>, %arg3: memref<2x32xf32, #tpu.memory_space<vmem>>, %arg4: memref<32x2xf32, #tpu.memory_space<vmem>>, %arg5: memref<1x32x16x256xf32, #tpu.memory_space<vmem>>) attributes {dimension_semantics = [#tpu.dimension_semantics<parallel>, #tpu.dimension_semantics<parallel>], iteration_bounds = array<i64: 2, 1>, scalar_prefetch = 0 : i64, scratch_operands = 0 : i64, tpu.core_type = #tpu.core_type<tc>, window_params = [{transform_indices = @transform_0, window_bounds = array<i64: 1, 32, 16, 256>}, {pipeline_mode = #tpu.pipeline_mode<synchronous>, transform_indices = @transform_1, window_bounds = array<i64: 2, 32>}, {pipeline_mode = #tpu.pipeline_mode<synchronous>, transform_indices = @transform_2, window_bounds = array<i64: 32, 2>}, {transform_indices = @transform_3, window_bounds = array<i64: 1, 32, 16, 256>}]} {
    %c0 = arith.constant 0 : index
    %c0_0 = arith.constant 0 : index
    %0 = vector.load %arg3[%c0, %c0_0] : memref<2x32xf32, #tpu.memory_space<vmem>>, vector<2x32xf32>
    %c0_1 = arith.constant 0 : index
    %c0_2 = arith.constant 0 : index
    %1 = vector.load %arg4[%c0_1, %c0_2] : memref<32x2xf32, #tpu.memory_space<vmem>>, vector<32x2xf32>
    %c0_3 = arith.constant 0 : index
    %c0_4 = arith.constant 0 : index
    %c0_5 = arith.constant 0 : index
    %c0_6 = arith.constant 0 : index
    %2 = vector.load %arg2[%c0_3, %c0_4, %c0_5, %c0_6] : memref<1x32x16x256xf32, #tpu.memory_space<vmem>>, vector<1x32x16x256xf32>
    %3 = vector.shape_cast %2 : vector<1x32x16x256xf32> to vector<32x16x256xf32>
    %cst = arith.constant dense<0.000000e+00> : vector<32x256xf32>
    %4 = vector.multi_reduction <add>, %3, %cst [1] : vector<32x16x256xf32> to vector<32x256xf32>
    %cst_7 = arith.constant dense<0xFF800000> : vector<32x256xf32>
    %5 = vector.multi_reduction <maximumf>, %3, %cst_7 [1] : vector<32x16x256xf32> to vector<32x256xf32>
    %cst_8 = arith.constant 6.250000e-02 : f32
    %6 = vector.broadcast %cst_8 : f32 to vector<32x256xf32>
    %7 = arith.mulf %4, %6 : vector<32x256xf32>
    %cst_9 = arith.constant dense<0.000000e+00> : vector<2x256xf32>
    %8 = tpu.matmul %0, %7, %cst_9 {dimension_numbers = #tpu.dot_dimension_numbers<[1], [0], [0], [1], [0, 0, 1, 1], [], []>} : vector<2x32xf32>, vector<32x256xf32>, vector<2x256xf32> -> vector<2x256xf32>
    %cst_10 = arith.constant 0.000000e+00 : f32
    %9 = vector.broadcast %cst_10 : f32 to vector<2x256xf32>
    %10 = arith.maximumf %8, %9 : vector<2x256xf32>
    %11 = vector.extract_strided_slice %1 {offsets = [0, 0], sizes = [32, 1], strides = [1, 1]} : vector<32x2xf32> to vector<32x1xf32>
    %12 = vector.extract_strided_slice %10 {offsets = [0, 0], sizes = [1, 256], strides = [1, 1]} : vector<2x256xf32> to vector<1x256xf32>
    %13 = vector.broadcast %11 : vector<32x1xf32> to vector<32x256xf32>
    %14 = vector.broadcast %12 : vector<1x256xf32> to vector<32x256xf32>
    %15 = arith.mulf %13, %14 : vector<32x256xf32>
    %16 = vector.extract_strided_slice %1 {offsets = [0, 1], sizes = [32, 1], strides = [1, 1]} : vector<32x2xf32> to vector<32x1xf32>
    %17 = vector.extract_strided_slice %10 {offsets = [1, 0], sizes = [1, 256], strides = [1, 1]} : vector<2x256xf32> to vector<1x256xf32>
    %18 = vector.broadcast %16 : vector<32x1xf32> to vector<32x256xf32>
    %19 = vector.broadcast %17 : vector<1x256xf32> to vector<32x256xf32>
    %20 = arith.mulf %18, %19 : vector<32x256xf32>
    %21 = arith.addf %15, %20 : vector<32x256xf32>
    %cst_11 = arith.constant dense<0.000000e+00> : vector<2x256xf32>
    %22 = tpu.matmul %0, %5, %cst_11 {dimension_numbers = #tpu.dot_dimension_numbers<[1], [0], [0], [1], [0, 0, 1, 1], [], []>} : vector<2x32xf32>, vector<32x256xf32>, vector<2x256xf32> -> vector<2x256xf32>
    %cst_12 = arith.constant 0.000000e+00 : f32
    %23 = vector.broadcast %cst_12 : f32 to vector<2x256xf32>
    %24 = arith.maximumf %22, %23 : vector<2x256xf32>
    %25 = vector.extract_strided_slice %1 {offsets = [0, 0], sizes = [32, 1], strides = [1, 1]} : vector<32x2xf32> to vector<32x1xf32>
    %26 = vector.extract_strided_slice %24 {offsets = [0, 0], sizes = [1, 256], strides = [1, 1]} : vector<2x256xf32> to vector<1x256xf32>
    %27 = vector.broadcast %25 : vector<32x1xf32> to vector<32x256xf32>
    %28 = vector.broadcast %26 : vector<1x256xf32> to vector<32x256xf32>
    %29 = arith.mulf %27, %28 : vector<32x256xf32>
    %30 = vector.extract_strided_slice %1 {offsets = [0, 1], sizes = [32, 1], strides = [1, 1]} : vector<32x2xf32> to vector<32x1xf32>
    %31 = vector.extract_strided_slice %24 {offsets = [1, 0], sizes = [1, 256], strides = [1, 1]} : vector<2x256xf32> to vector<1x256xf32>
    %32 = vector.broadcast %30 : vector<32x1xf32> to vector<32x256xf32>
    %33 = vector.broadcast %31 : vector<1x256xf32> to vector<32x256xf32>
    %34 = arith.mulf %32, %33 : vector<32x256xf32>
    %35 = arith.addf %29, %34 : vector<32x256xf32>
    %36 = arith.addf %21, %35 : vector<32x256xf32>
    %37 = arith.negf %36 : vector<32x256xf32>
    %38 = math.exp %37 : vector<32x256xf32>
    %cst_13 = arith.constant 1.000000e+00 : f32
    %39 = vector.broadcast %cst_13 : f32 to vector<32x256xf32>
    %40 = arith.addf %39, %38 : vector<32x256xf32>
    %41 = arith.divf %39, %40 : vector<32x256xf32>
    %42 = vector.shape_cast %41 : vector<32x256xf32> to vector<32x1x256xf32>
    %43 = vector.broadcast %42 : vector<32x1x256xf32> to vector<32x16x256xf32>
    %44 = arith.mulf %43, %3 : vector<32x16x256xf32>
    %c0_14 = arith.constant 0 : index
    %c0_15 = arith.constant 0 : index
    %c0_16 = arith.constant 0 : index
    %c0_17 = arith.constant 0 : index
    %45 = vector.load %arg5[%c0_14, %c0_15, %c0_16, %c0_17] : memref<1x32x16x256xf32, #tpu.memory_space<vmem>>, vector<1x32x16x256xf32>
    %46 = vector.shape_cast %45 : vector<1x32x16x256xf32> to vector<32x16x256xf32>
    %47 = vector.shape_cast %44 : vector<32x16x256xf32> to vector<1x32x16x256xf32>
    tpu.vector_store %arg5[%c0_14, %c0_15, %c0_16, %c0_17], %47 {strides = array<i32>} : memref<1x32x16x256xf32, #tpu.memory_space<vmem>>, vector<1x32x16x256xf32>,
    return
  }
  func.func @transform_0(%arg0: i32, %arg1: i32) -> (i32, i32, i32, i32) {
    %c0_i32 = arith.constant 0 : i32
    %c0_i32_0 = arith.constant 0 : i32
    %c0_i32_1 = arith.constant 0 : i32
    return %arg0, %c0_i32, %c0_i32_0, %arg1 : i32, i32, i32, i32
  }
  func.func @transform_1(%arg0: i32, %arg1: i32) -> (i32, i32) {
    %c0_i32 = arith.constant 0 : i32
    %c0_i32_0 = arith.constant 0 : i32
    %c0_i32_1 = arith.constant 0 : i32
    return %c0_i32, %c0_i32_0 : i32, i32
  }
  func.func @transform_2(%arg0: i32, %arg1: i32) -> (i32, i32) {
    %c0_i32 = arith.constant 0 : i32
    %c0_i32_0 = arith.constant 0 : i32
    %c0_i32_1 = arith.constant 0 : i32
    return %c0_i32, %c0_i32_0 : i32, i32
  }
  func.func @transform_3(%arg0: i32, %arg1: i32) -> (i32, i32, i32, i32) {
    %c0_i32 = arith.constant 0 : i32
    %c0_i32_0 = arith.constant 0 : i32
    %c0_i32_1 = arith.constant 0 : i32
    return %arg0, %c0_i32, %c0_i32_0, %arg1 : i32, i32, i32, i32
  }
}

</mosaic_0001>

<llo_original>
// kernel: tpu_custom_call.1
$region0: #{tpu_custom_call.1}
  #allocation0 [shape = 'u32[]', space=smem, size = 0x4, offset = 0x4, fixed_abs, tag = 'smem constant byte address 0x4 - core index']
  #allocation1 [shape = 'u32[72,128]{1,0:T(1,128)}', space=vmem, size = 0x9000, scoped, tag = 'internal scratch']
  %s0 = inlined_call_operand.hbm [shape: f32[2,32,16,256], index: 0, kind: input, shape index: {}]
  %s1 = inlined_call_operand.vmem [shape: f32[2,32], index: 1, kind: input, shape index: {}]
  %s2 = inlined_call_operand.vmem [shape: f32[32,2], index: 2, kind: input, shape index: {}]
  %s3 = inlined_call_operand.hbm [shape: f32[2,32,16,256], index: 3, kind: output, shape index: {}]
  %s4 = sld [smem:[#allocation0]]
  $region49: #{tpu_custom_call.1} parent=0
    _
  %s6 = ssub.s32 1, %s4
  %s7 = scalar_select 0, %s6, %s4
  $region1: #{tpu_custom_call.1} parent=0
    #allocation2 [shape = 'u8[1048576]{0}', space=vmem, size = 0x100000, scoped, tag = 'input window, operand 0']
    #allocation3 [shape = 's32[2]{0}', space=sflag, size = 0x8, scoped, tag = 'scoped memory for tpu_custom_call.1']
    #allocation4 [shape = 's32[2]{0}', space=sflag, size = 0x8, scoped, tag = 'scoped memory for tpu_custom_call.1']
    #allocation5 [shape = 'u8[1048576]{0}', space=vmem, size = 0x100000, scoped, tag = 'output window, operand 0']
    %8 = vsyncpa [#allocation3], 0
    %s9 = scalar_lea.sflag [#allocation3], 1
    %10 = vsyncpa %s9, 0
    %11 = vsyncpa [#allocation4], 0
    %s12 = scalar_lea.sflag [#allocation4], 1
    %13 = vsyncpa %s12, 0
    loop: start=0, step=1, limit=4
    $region2: #{tpu_custom_call.1} parent=1 // loop_pre_header
      _
    $region3: #{tpu_custom_call.1} parent=1 // loop_header
      %s15 = sphi 0, %s19
      %p16 = scmp.ge.s32.totalorder %s15, 4
      %s22 = sphi 0, %s34
      %s23 = sphi 0, %s30
      %s24 = sphi 0, %s22
      %s25 = sphi 0, %s23
      %s26 = sphi 0, %s24
      %s27 = sphi 0, %s25
      %s39 = sphi 0, %s41
      %s42 = sphi 0, %s39
      %s43 = sphi 0, %s42
      %s59 = sphi 0, %s43
      %s63 = sphi 0, %s63
      %s65 = sphi 0, %s63
      %s66 = sphi 0, %s65
      %s80 = sphi 0, %s66
      %s84 = sphi 0, %s84
      %s86 = sphi 0, %s84
      %s87 = sphi 0, %s86
      %s101 = sphi 0, %s87
      %s109 = sphi 0, %s111
      %s112 = sphi 0, %s109
      %s113 = sphi 0, %s112
      %s129 = sphi 0, %s113
    $region4: #{tpu_custom_call.1} parent=1 // loop_header_branch
      %18 = sbr.rel (%p16) target = $region8
    $region5: #{tpu_custom_call.1} parent=1 // loop_body
      %s20 = ssub.s32 %s15, 1
      %s21 = ssub.s32 %s15, 2
      %s28 = sadd.s32 1, %s23
      %p29 = scmp.ge.s32.totalorder %s28, 1
      %s30 = scalar_select %p29, 0, %s28
      %s31 = sadd.s32 1, %s22
      %s32 = scalar_select %p29, %s31, %s22
      %p33 = scmp.ge.s32.totalorder %s32, 2
      %s34 = scalar_select %p33, 0, %s32
      %s35 = ssub.s32 %s22, %s34
      %s36 = ssub.s32 %s23, %s30
      %s37 = sor.u32 %s35, %s36
      %p38 = scmp.eq.s32.totalorder %s37, 0
      %s40 = sadd.s32 %s39, 1
      %s41 = scalar_select %p38, %s39, %s40
      %p44 = pneg %p38
      %p45 = scmp.eq.s32.totalorder %s15, 1
      %p46 = por %p44, %p45
      %p47 = scmp.ne.s32.totalorder %s39, %s42
      %p48 = scmp.eq.s32.totalorder %s15, 0
      %p49 = por %p47, %p48
      %p50 = scmp.ne.s32.totalorder %s39, %s42
      %p51 = scmp.eq.s32.totalorder %s20, 1
      %p52 = por %p50, %p51
      %p53 = scmp.ne.s32.totalorder %s42, %s43
      %p54 = scmp.eq.s32.totalorder %s20, 0
      %p55 = por %p53, %p54
      %p56 = scmp.ne.s32.totalorder %s42, %s43
      %p57 = scmp.eq.s32.totalorder %s21, 1
      %p58 = por %p56, %p57
      %p60 = scmp.ne.s32.totalorder %s43, %s59
      %p61 = scmp.eq.s32.totalorder %s21, 0
      %p62 = por %p60, %p61
      %s64 = sadd.s32 %s63, 1
      %p67 = scmp.eq.s32.totalorder %s15, 1
      %p68 = scmp.ne.s32.totalorder %s63, %s65
      %p69 = scmp.eq.s32.totalorder %s15, 0
      %p70 = por %p68, %p69
      %p71 = scmp.ne.s32.totalorder %s63, %s65
      %p72 = scmp.eq.s32.totalorder %s20, 1
      %p73 = por %p71, %p72
      %p74 = scmp.ne.s32.totalorder %s65, %s66
      %p75 = scmp.eq.s32.totalorder %s20, 0
      %p76 = por %p74, %p75
      %p77 = scmp.ne.s32.totalorder %s65, %s66
      %p78 = scmp.eq.s32.totalorder %s21, 1
      %p79 = por %p77, %p78
      %p81 = scmp.ne.s32.totalorder %s66, %s80
      %p82 = scmp.eq.s32.totalorder %s21, 0
      %p83 = por %p81, %p82
      %s85 = sadd.s32 %s84, 1
      %p88 = scmp.eq.s32.totalorder %s15, 1
      %p89 = scmp.ne.s32.totalorder %s84, %s86
      %p90 = scmp.eq.s32.totalorder %s15, 0
      %p91 = por %p89, %p90
      %p92 = scmp.ne.s32.totalorder %s84, %s86
      %p93 = scmp.eq.s32.totalorder %s20, 1
      %p94 = por %p92, %p93
      %p95 = scmp.ne.s32.totalorder %s86, %s87
      %p96 = scmp.eq.s32.totalorder %s20, 0
      %p97 = por %p95, %p96
      %p98 = scmp.ne.s32.totalorder %s86, %s87
      %p99 = scmp.eq.s32.totalorder %s21, 1
      %p100 = por %p98, %p99
      %p102 = scmp.ne.s32.totalorder %s87, %s101
      %p103 = scmp.eq.s32.totalorder %s21, 0
      %p104 = por %p102, %p103
      %s105 = ssub.s32 %s22, %s34
      %s106 = ssub.s32 %s23, %s30
      %s107 = sor.u32 %s105, %s106
      %p108 = scmp.eq.s32.totalorder %s107, 0
      %s110 = sadd.s32 %s109, 1
      %s111 = scalar_select %p108, %s109, %s110
      %p114 = pneg %p108
      %p115 = scmp.eq.s32.totalorder %s15, 1
      %p116 = por %p114, %p115
      %p117 = scmp.ne.s32.totalorder %s109, %s112
      %p118 = scmp.eq.s32.totalorder %s15, 0
      %p119 = por %p117, %p118
      %p120 = scmp.ne.s32.totalorder %s109, %s112
      %p121 = scmp.eq.s32.totalorder %s20, 1
      %p122 = por %p120, %p121
      %p123 = scmp.ne.s32.totalorder %s112, %s113
      %p124 = scmp.eq.s32.totalorder %s20, 0
      %p125 = por %p123, %p124
      %p126 = scmp.ne.s32.totalorder %s112, %s113
      %p127 = scmp.eq.s32.totalorder %s21, 1
      %p128 = por %p126, %p127
      %p130 = scmp.ne.s32.totalorder %s113, %s129
      %p131 = scmp.eq.s32.totalorder %s21, 0
      %p132 = por %p130, %p131
      %p133 = scmp.le.s32.totalorder 1, %s15
      %p134 = scmp.lt.s32.totalorder %s15, 3
      %p135 = pnand %p133, %p134
      %p136 = pneg %p135
      // Predicated region
      $region9: #{tpu_custom_call.1} parent=5 // pred_check
        _
      $region10: #{tpu_custom_call.1} parent=5 // pred_check_branch
        %138 = sbr.rel (%p135) target = $region12
      $region11: #{tpu_custom_call.1} parent=5 // pred_region
        %s139 = ssub.s32 %s15, 1
        // Predicated region
        $region13: #{tpu_custom_call.1} parent=11 // pred_check
          %p140 = pneg %p76
        $region14: #{tpu_custom_call.1} parent=11 // pred_check_branch
          %142 = sbr.rel (%p140) target = $region16
        $region15: #{tpu_custom_call.1} parent=11 // pred_region
          _
        $region16: #{tpu_custom_call.1} parent=11 // pred_fallthru
          _
        // Predicated region
        $region17: #{tpu_custom_call.1} parent=11 // pred_check
          %p143 = pneg %p97
        $region18: #{tpu_custom_call.1} parent=11 // pred_check_branch
          %145 = sbr.rel (%p143) target = $region20
        $region19: #{tpu_custom_call.1} parent=11 // pred_region
          _
        $region20: #{tpu_custom_call.1} parent=11 // pred_fallthru
          _
      $region12: #{tpu_custom_call.1} parent=5 // pred_fallthru
        _
      %p146 = scmp.lt.s32.totalorder %s15, 2
      // Predicated region
      $region21: #{tpu_custom_call.1} parent=5 // pred_check
        %p147 = pneg %p146
      $region22: #{tpu_custom_call.1} parent=5 // pred_check_branch
        %149 = sbr.rel (%p147) target = $region24
      $region23: #{tpu_custom_call.1} parent=5 // pred_region
        // Predicated region
        $region25: #{tpu_custom_call.1} parent=23 // pred_check
          %p150 = pneg %p49
        $region26: #{tpu_custom_call.1} parent=23 // pred_check_branch
          %152 = sbr.rel (%p150) target = $region28
        $region27: #{tpu_custom_call.1} parent=23 // pred_region
          %s153 = sand.u32 %s39, 1
          %s154 = scalar_lea.sflag [#allocation3], %s153
          %s155 = sand.u32 %s39, 1
          %s156 = smul.addr %s155, 1024
          %s157 = scalar_lea.vmem [#allocation2], %s156
          %s158 = smul.u32 2, %s23
          %160 = vsyncadd %s154, 0
          %s161 = smul.addr %s22, 128
          %s162 = sadd.s32 %s158, %s161
          %s163 = smul.addr %s162, 8
          %s164 = scalar_lea.hbm %s0, %s163
          %s165 = sshll.u32 %s164, 4
          %s166 = int_to_ptr.hbm [resolvable:$true] %s165
          %s167 = sshll.u32 %s157, 4
          %s168 = int_to_ptr.vmem [resolvable:$true] %s167
          %173 = dma.hbm_to_vmem [thread:$0]  %s166, 16384, %s168, %s154, 256, 256, 16
        $region28: #{tpu_custom_call.1} parent=23 // pred_fallthru
          _
      $region24: #{tpu_custom_call.1} parent=5 // pred_fallthru
        _
      %p174 = scmp.le.s32.totalorder 1, %s15
      %p175 = scmp.lt.s32.totalorder %s15, 3
      %p176 = pnand %p174, %p175
      %p177 = pneg %p176
      // Predicated region
      $region29: #{tpu_custom_call.1} parent=5 // pred_check
        _
      $region30: #{tpu_custom_call.1} parent=5 // pred_check_branch
        %179 = sbr.rel (%p176) target = $region32
      $region31: #{tpu_custom_call.1} parent=5 // pred_region
        %s180 = ssub.s32 %s15, 1
        %s181 = sand.u32 %s42, 1
        %s182 = scalar_lea.sflag [#allocation3], %s181
        %s183 = sand.u32 %s42, 1
        %s184 = smul.addr %s183, 1024
        %s185 = scalar_lea.vmem [#allocation2], %s184
        // Predicated region
        $region33: #{tpu_custom_call.1} parent=31 // pred_check
          %p186 = pneg %p55
        $region34: #{tpu_custom_call.1} parent=31 // pred_check_branch
          %188 = sbr.rel (%p186) target = $region36
        $region35: #{tpu_custom_call.1} parent=31 // pred_region
          %190 = dma.done %s182, 16384
        $region36: #{tpu_custom_call.1} parent=31 // pred_fallthru
          _
        %s191 = sand.u32 %s42, 1
        %s192 = scalar_lea.sflag [#allocation3], %s191
        %s193 = sand.u32 %s42, 1
        %s194 = smul.addr %s193, 1024
        %s195 = scalar_lea.vmem [#allocation2], %s194
        %p196 = pneg %p55
        %p197 = pneg %p52
        %p198 = pneg %p76
        %p199 = pneg %p73
        %p200 = pneg %p97
        %p201 = pneg %p94
        %p202 = pneg %p125
        %p203 = pneg %p122
        %s204 = sand.u32 %s112, 1
        %s205 = scalar_lea.sflag [#allocation4], %s204
        %s206 = sand.u32 %s112, 1
        %s207 = smul.addr %s206, 1024
        %s208 = scalar_lea.vmem [#allocation5], %s207
        %s209 = smul.u32 2, %s25
        %s210 = smul.u32 2, %s25
        %v211 = vld [vmem:[%s1] sm:$0x3]
        %v212 = vld [vmem:[%s2] sm:$0xff]
        %v213 = vld [vmem:[%s2 + $0x8] sm:$0xff]
        %v214 = vld [vmem:[%s2 + $0x10] sm:$0xff]
        %v215 = vld [vmem:[%s2 + $0x18] sm:$0xff]
        %v216 = vld [vmem:[%s185] sm:$0xff]
        %v217 = vld [vmem:[%s185 + $0x8] sm:$0xff]
        %v218 = vld [vmem:[%s185 + $0x10] sm:$0xff]
        %v219 = vld [vmem:[%s185 + $0x18] sm:$0xff]
        %v220 = vld [vmem:[%s185 + $0x20] sm:$0xff]
        %v221 = vld [vmem:[%s185 + $0x28] sm:$0xff]
        %v222 = vld [vmem:[%s185 + $0x30] sm:$0xff]
        %v223 = vld [vmem:[%s185 + $0x38] sm:$0xff]
        %v224 = vld [vmem:[%s185 + $0x40] sm:$0xff]
        %v225 = vld [vmem:[%s185 + $0x48] sm:$0xff]
        %v226 = vld [vmem:[%s185 + $0x50] sm:$0xff]
        %v227 = vld [vmem:[%s185 + $0x58] sm:$0xff]
        %v228 = vld [vmem:[%s185 + $0x60] sm:$0xff]
        %v229 = vld [vmem:[%s185 + $0x68] sm:$0xff]
        %v230 = vld [vmem:[%s185 + $0x70] sm:$0xff]
        %v231 = vld [vmem:[%s185 + $0x78] sm:$0xff]
        %v232 = vld [vmem:[%s185 + $0x80] sm:$0xff]
        %v233 = vld [vmem:[%s185 + $0x88] sm:$0xff]
        %v234 = vld [vmem:[%s185 + $0x90] sm:$0xff]
        %v235 = vld [vmem:[%s185 + $0x98] sm:$0xff]
        %v236 = vld [vmem:[%s185 + $0xa0] sm:$0xff]
        %v237 = vld [vmem:[%s185 + $0xa8] sm:$0xff]
        %v238 = vld [vmem:[%s185 + $0xb0] sm:$0xff]
        %v239 = vld [vmem:[%s185 + $0xb8] sm:$0xff]
        %v240 = vld [vmem:[%s185 + $0xc0] sm:$0xff]
        %v241 = vld [vmem:[%s185 + $0xc8] sm:$0xff]
        %v242 = vld [vmem:[%s185 + $0xd0] sm:$0xff]
        %v243 = vld [vmem:[%s185 + $0xd8] sm:$0xff]
        %v244 = vld [vmem:[%s185 + $0xe0] sm:$0xff]
        %v245 = vld [vmem:[%s185 + $0xe8] sm:$0xff]
        %v246 = vld [vmem:[%s185 + $0xf0] sm:$0xff]
        %v247 = vld [vmem:[%s185 + $0xf8] sm:$0xff]
        %v248 = vld [vmem:[%s185 + $0x100] sm:$0xff]
        %v249 = vld [vmem:[%s185 + $0x108] sm:$0xff]
        %v250 = vld [vmem:[%s185 + $0x110] sm:$0xff]
        %v251 = vld [vmem:[%s185 + $0x118] sm:$0xff]
        %v252 = vld [vmem:[%s185 + $0x120] sm:$0xff]
        %v253 = vld [vmem:[%s185 + $0x128] sm:$0xff]
        %v254 = vld [vmem:[%s185 + $0x130] sm:$0xff]
        %v255 = vld [vmem:[%s185 + $0x138] sm:$0xff]
        %v256 = vld [vmem:[%s185 + $0x140] sm:$0xff]
        %v257 = vld [vmem:[%s185 + $0x148] sm:$0xff]
        %v258 = vld [vmem:[%s185 + $0x150] sm:$0xff]
        %v259 = vld [vmem:[%s185 + $0x158] sm:$0xff]
        %v260 = vld [vmem:[%s185 + $0x160] sm:$0xff]
        %v261 = vld [vmem:[%s185 + $0x168] sm:$0xff]
        %v262 = vld [vmem:[%s185 + $0x170] sm:$0xff]
        %v263 = vld [vmem:[%s185 + $0x178] sm:$0xff]
        %v264 = vld [vmem:[%s185 + $0x180] sm:$0xff]
        %v265 = vld [vmem:[%s185 + $0x188] sm:$0xff]
        %v266 = vld [vmem:[%s185 + $0x190] sm:$0xff]
        %v267 = vld [vmem:[%s185 + $0x198] sm:$0xff]
        %v268 = vld [vmem:[%s185 + $0x1a0] sm:$0xff]
        %v269 = vld [vmem:[%s185 + $0x1a8] sm:$0xff]
        %v270 = vld [vmem:[%s185 + $0x1b0] sm:$0xff]
        %v271 = vld [vmem:[%s185 + $0x1b8] sm:$0xff]
        %v272 = vld [vmem:[%s185 + $0x1c0] sm:$0xff]
        %v273 = vld [vmem:[%s185 + $0x1c8] sm:$0xff]
        %v274 = vld [vmem:[%s185 + $0x1d0] sm:$0xff]
        %v275 = vld [vmem:[%s185 + $0x1d8] sm:$0xff]
        %v276 = vld [vmem:[%s185 + $0x1e0] sm:$0xff]
        %v277 = vld [vmem:[%s185 + $0x1e8] sm:$0xff]
        %v278 = vld [vmem:[%s185 + $0x1f0] sm:$0xff]
        %v279 = vld [vmem:[%s185 + $0x1f8] sm:$0xff]
        %v280 = vld [vmem:[%s185 + $0x200] sm:$0xff]
        %v281 = vld [vmem:[%s185 + $0x208] sm:$0xff]
        %v282 = vld [vmem:[%s185 + $0x210] sm:$0xff]
        %v283 = vld [vmem:[%s185 + $0x218] sm:$0xff]
        %v284 = vld [vmem:[%s185 + $0x220] sm:$0xff]
        %v285 = vld [vmem:[%s185 + $0x228] sm:$0xff]
        %v286 = vld [vmem:[%s185 + $0x230] sm:$0xff]
        %v287 = vld [vmem:[%s185 + $0x238] sm:$0xff]
        %v288 = vld [vmem:[%s185 + $0x240] sm:$0xff]
        %v289 = vld [vmem:[%s185 + $0x248] sm:$0xff]
        %v290 = vld [vmem:[%s185 + $0x250] sm:$0xff]
        %v291 = vld [vmem:[%s185 + $0x258] sm:$0xff]
        %v292 = vld [vmem:[%s185 + $0x260] sm:$0xff]
        %v293 = vld [vmem:[%s185 + $0x268] sm:$0xff]
        %v294 = vld [vmem:[%s185 + $0x270] sm:$0xff]
        %v295 = vld [vmem:[%s185 + $0x278] sm:$0xff]
        %v296 = vld [vmem:[%s185 + $0x280] sm:$0xff]
        %v297 = vld [vmem:[%s185 + $0x288] sm:$0xff]
        %v298 = vld [vmem:[%s185 + $0x290] sm:$0xff]
        %v299 = vld [vmem:[%s185 + $0x298] sm:$0xff]
        %v300 = vld [vmem:[%s185 + $0x2a0] sm:$0xff]
        %v301 = vld [vmem:[%s185 + $0x2a8] sm:$0xff]
        %v302 = vld [vmem:[%s185 + $0x2b0] sm:$0xff]
        %v303 = vld [vmem:[%s185 + $0x2b8] sm:$0xff]
        %v304 = vld [vmem:[%s185 + $0x2c0] sm:$0xff]
        %v305 = vld [vmem:[%s185 + $0x2c8] sm:$0xff]
        %v306 = vld [vmem:[%s185 + $0x2d0] sm:$0xff]
        %v307 = vld [vmem:[%s185 + $0x2d8] sm:$0xff]
        %v308 = vld [vmem:[%s185 + $0x2e0] sm:$0xff]
        %v309 = vld [vmem:[%s185 + $0x2e8] sm:$0xff]
        %v310 = vld [vmem:[%s185 + $0x2f0] sm:$0xff]
        %v311 = vld [vmem:[%s185 + $0x2f8] sm:$0xff]
        %v312 = vld [vmem:[%s185 + $0x300] sm:$0xff]
        %v313 = vld [vmem:[%s185 + $0x308] sm:$0xff]
        %v314 = vld [vmem:[%s185 + $0x310] sm:$0xff]
        %v315 = vld [vmem:[%s185 + $0x318] sm:$0xff]
        %v316 = vld [vmem:[%s185 + $0x320] sm:$0xff]
        %v317 = vld [vmem:[%s185 + $0x328] sm:$0xff]
        %v318 = vld [vmem:[%s185 + $0x330] sm:$0xff]
        %v319 = vld [vmem:[%s185 + $0x338] sm:$0xff]
        %v320 = vld [vmem:[%s185 + $0x340] sm:$0xff]
        %v321 = vld [vmem:[%s185 + $0x348] sm:$0xff]
        %v322 = vld [vmem:[%s185 + $0x350] sm:$0xff]
        %v323 = vld [vmem:[%s185 + $0x358] sm:$0xff]
        %v324 = vld [vmem:[%s185 + $0x360] sm:$0xff]
        %v325 = vld [vmem:[%s185 + $0x368] sm:$0xff]
        %v326 = vld [vmem:[%s185 + $0x370] sm:$0xff]
        %v327 = vld [vmem:[%s185 + $0x378] sm:$0xff]
        %v328 = vld [vmem:[%s185 + $0x380] sm:$0xff]
        %v329 = vld [vmem:[%s185 + $0x388] sm:$0xff]
        %v330 = vld [vmem:[%s185 + $0x390] sm:$0xff]
        %v331 = vld [vmem:[%s185 + $0x398] sm:$0xff]
        %v332 = vld [vmem:[%s185 + $0x3a0] sm:$0xff]
        %v333 = vld [vmem:[%s185 + $0x3a8] sm:$0xff]
        %v334 = vld [vmem:[%s185 + $0x3b0] sm:$0xff]
        %v335 = vld [vmem:[%s185 + $0x3b8] sm:$0xff]
        %v336 = vld [vmem:[%s185 + $0x3c0] sm:$0xff]
        %v337 = vld [vmem:[%s185 + $0x3c8] sm:$0xff]
        %v338 = vld [vmem:[%s185 + $0x3d0] sm:$0xff]
        %v339 = vld [vmem:[%s185 + $0x3d8] sm:$0xff]
        %v340 = vld [vmem:[%s185 + $0x3e0] sm:$0xff]
        %v341 = vld [vmem:[%s185 + $0x3e8] sm:$0xff]
        %v342 = vld [vmem:[%s185 + $0x3f0] sm:$0xff]
        %v343 = vld [vmem:[%s185 + $0x3f8] sm:$0xff]
        %v344 = vadd.f32 %v216, %v218
        %v345 = vrot.slane %v344, 4
        %v346 = vadd.f32 %v344, %v345
        %v347 = vrot.slane %v346, 2
        %v348 = vadd.f32 %v346, %v347
        %v349 = vrot.slane %v348, 1
        %v350 = vadd.f32 %v348, %v349
        %v351 = vadd.f32 %v217, %v219
        %v352 = vrot.slane %v351, 4
        %v353 = vadd.f32 %v351, %v352
        %v354 = vrot.slane %v353, 2
        %v355 = vadd.f32 %v353, %v354
        %v356 = vrot.slane %v355, 1
        %v357 = vadd.f32 %v355, %v356
        %v358 = vadd.f32 %v220, %v222
        %v359 = vrot.slane %v358, 4
        %v360 = vadd.f32 %v358, %v359
        %v361 = vrot.slane %v360, 2
        %v362 = vadd.f32 %v360, %v361
        %v363 = vrot.slane %v362, 1
        %v364 = vadd.f32 %v362, %v363
        %v365 = vadd.f32 %v221, %v223
        %v366 = vrot.slane %v365, 4
        %v367 = vadd.f32 %v365, %v366
        %v368 = vrot.slane %v367, 2
        %v369 = vadd.f32 %v367, %v368
        %v370 = vrot.slane %v369, 1
        %v371 = vadd.f32 %v369, %v370
        %v372 = vadd.f32 %v224, %v226
        %v373 = vrot.slane %v372, 4
        %v374 = vadd.f32 %v372, %v373
        %v375 = vrot.slane %v374, 2
        %v376 = vadd.f32 %v374, %v375
        %v377 = vrot.slane %v376, 1
        %v378 = vadd.f32 %v376, %v377
        %v379 = vadd.f32 %v225, %v227
        %v380 = vrot.slane %v379, 4
        %v381 = vadd.f32 %v379, %v380
        %v382 = vrot.slane %v381, 2
        %v383 = vadd.f32 %v381, %v382
        %v384 = vrot.slane %v383, 1
        %v385 = vadd.f32 %v383, %v384
        %v386 = vadd.f32 %v228, %v230
        %v387 = vrot.slane %v386, 4
        %v388 = vadd.f32 %v386, %v387
        %v389 = vrot.slane %v388, 2
        %v390 = vadd.f32 %v388, %v389
        %v391 = vrot.slane %v390, 1
        %v392 = vadd.f32 %v390, %v391
        %v393 = vadd.f32 %v229, %v231
        %v394 = vrot.slane %v393, 4
        %v395 = vadd.f32 %v393, %v394
        %v396 = vrot.slane %v395, 2
        %v397 = vadd.f32 %v395, %v396
        %v398 = vrot.slane %v397, 1
        %v399 = vadd.f32 %v397, %v398
        %v400 = vadd.f32 %v232, %v234
        %v401 = vrot.slane %v400, 4
        %v402 = vadd.f32 %v400, %v401
        %v403 = vrot.slane %v402, 2
        %v404 = vadd.f32 %v402, %v403
        %v405 = vrot.slane %v404, 1
        %v406 = vadd.f32 %v404, %v405
        %v407 = vadd.f32 %v233, %v235
        %v408 = vrot.slane %v407, 4
        %v409 = vadd.f32 %v407, %v408
        %v410 = vrot.slane %v409, 2
        %v411 = vadd.f32 %v409, %v410
        %v412 = vrot.slane %v411, 1
        %v413 = vadd.f32 %v411, %v412
        %v414 = vadd.f32 %v236, %v238
        %v415 = vrot.slane %v414, 4
        %v416 = vadd.f32 %v414, %v415
        %v417 = vrot.slane %v416, 2
        %v418 = vadd.f32 %v416, %v417
        %v419 = vrot.slane %v418, 1
        %v420 = vadd.f32 %v418, %v419
        %v421 = vadd.f32 %v237, %v239
        %v422 = vrot.slane %v421, 4
        %v423 = vadd.f32 %v421, %v422
        %v424 = vrot.slane %v423, 2
        %v425 = vadd.f32 %v423, %v424
        %v426 = vrot.slane %v425, 1
        %v427 = vadd.f32 %v425, %v426
        %v428 = vadd.f32 %v240, %v242
        %v429 = vrot.slane %v428, 4
        %v430 = vadd.f32 %v428, %v429
        %v431 = vrot.slane %v430, 2
        %v432 = vadd.f32 %v430, %v431
        %v433 = vrot.slane %v432, 1
        %v434 = vadd.f32 %v432, %v433
        %v435 = vadd.f32 %v241, %v243
        %v436 = vrot.slane %v435, 4
        %v437 = vadd.f32 %v435, %v436
        %v438 = vrot.slane %v437, 2
        %v439 = vadd.f32 %v437, %v438
        %v440 = vrot.slane %v439, 1
        %v441 = vadd.f32 %v439, %v440
        %v442 = vadd.f32 %v244, %v246
        %v443 = vrot.slane %v442, 4
        %v444 = vadd.f32 %v442, %v443
        %v445 = vrot.slane %v444, 2
        %v446 = vadd.f32 %v444, %v445
        %v447 = vrot.slane %v446, 1
        %v448 = vadd.f32 %v446, %v447
        %v449 = vadd.f32 %v245, %v247
        %v450 = vrot.slane %v449, 4
        %v451 = vadd.f32 %v449, %v450
        %v452 = vrot.slane %v451, 2
        %v453 = vadd.f32 %v451, %v452
        %v454 = vrot.slane %v453, 1
        %v455 = vadd.f32 %v453, %v454
        %v456 = vadd.f32 %v248, %v250
        %v457 = vrot.slane %v456, 4
        %v458 = vadd.f32 %v456, %v457
        %v459 = vrot.slane %v458, 2
        %v460 = vadd.f32 %v458, %v459
        %v461 = vrot.slane %v460, 1
        %v462 = vadd.f32 %v460, %v461
        %v463 = vadd.f32 %v249, %v251
        %v464 = vrot.slane %v463, 4
        %v465 = vadd.f32 %v463, %v464
        %v466 = vrot.slane %v465, 2
        %v467 = vadd.f32 %v465, %v466
        %v468 = vrot.slane %v467, 1
        %v469 = vadd.f32 %v467, %v468
        %v470 = vadd.f32 %v252, %v254
        %v471 = vrot.slane %v470, 4
        %v472 = vadd.f32 %v470, %v471
        %v473 = vrot.slane %v472, 2
        %v474 = vadd.f32 %v472, %v473
        %v475 = vrot.slane %v474, 1
        %v476 = vadd.f32 %v474, %v475
        %v477 = vadd.f32 %v253, %v255
        %v478 = vrot.slane %v477, 4
        %v479 = vadd.f32 %v477, %v478
        %v480 = vrot.slane %v479, 2
        %v481 = vadd.f32 %v479, %v480
        %v482 = vrot.slane %v481, 1
        %v483 = vadd.f32 %v481, %v482
        %v484 = vadd.f32 %v256, %v258
        %v485 = vrot.slane %v484, 4
        %v486 = vadd.f32 %v484, %v485
        %v487 = vrot.slane %v486, 2
        %v488 = vadd.f32 %v486, %v487
        %v489 = vrot.slane %v488, 1
        %v490 = vadd.f32 %v488, %v489
        %v491 = vadd.f32 %v257, %v259
        %v492 = vrot.slane %v491, 4
        %v493 = vadd.f32 %v491, %v492
        %v494 = vrot.slane %v493, 2
        %v495 = vadd.f32 %v493, %v494
        %v496 = vrot.slane %v495, 1
        %v497 = vadd.f32 %v495, %v496
        %v498 = vadd.f32 %v260, %v262
        %v499 = vrot.slane %v498, 4
        %v500 = vadd.f32 %v498, %v499
        %v501 = vrot.slane %v500, 2
        %v502 = vadd.f32 %v500, %v501
        %v503 = vrot.slane %v502, 1
        %v504 = vadd.f32 %v502, %v503
        %v505 = vadd.f32 %v261, %v263
        %v506 = vrot.slane %v505, 4
        %v507 = vadd.f32 %v505, %v506
        %v508 = vrot.slane %v507, 2
        %v509 = vadd.f32 %v507, %v508
        %v510 = vrot.slane %v509, 1
        %v511 = vadd.f32 %v509, %v510
        %v512 = vadd.f32 %v264, %v266
        %v513 = vrot.slane %v512, 4
        %v514 = vadd.f32 %v512, %v513
        %v515 = vrot.slane %v514, 2
        %v516 = vadd.f32 %v514, %v515
        %v517 = vrot.slane %v516, 1
        %v518 = vadd.f32 %v516, %v517
        %v519 = vadd.f32 %v265, %v267
        %v520 = vrot.slane %v519, 4
        %v521 = vadd.f32 %v519, %v520
        %v522 = vrot.slane %v521, 2
        %v523 = vadd.f32 %v521, %v522
        %v524 = vrot.slane %v523, 1
        %v525 = vadd.f32 %v523, %v524
        %v526 = vadd.f32 %v268, %v270
        %v527 = vrot.slane %v526, 4
        %v528 = vadd.f32 %v526, %v527
        %v529 = vrot.slane %v528, 2
        %v530 = vadd.f32 %v528, %v529
        %v531 = vrot.slane %v530, 1
        %v532 = vadd.f32 %v530, %v531
        %v533 = vadd.f32 %v269, %v271
        %v534 = vrot.slane %v533, 4
        %v535 = vadd.f32 %v533, %v534
        %v536 = vrot.slane %v535, 2
        %v537 = vadd.f32 %v535, %v536
        %v538 = vrot.slane %v537, 1
        %v539 = vadd.f32 %v537, %v538
        %v540 = vadd.f32 %v272, %v274
        %v541 = vrot.slane %v540, 4
        %v542 = vadd.f32 %v540, %v541
        %v543 = vrot.slane %v542, 2
        %v544 = vadd.f32 %v542, %v543
        %v545 = vrot.slane %v544, 1
        %v546 = vadd.f32 %v544, %v545
        %v547 = vadd.f32 %v273, %v275
        %v548 = vrot.slane %v547, 4
        %v549 = vadd.f32 %v547, %v548
        %v550 = vrot.slane %v549, 2
        %v551 = vadd.f32 %v549, %v550
        %v552 = vrot.slane %v551, 1
        %v553 = vadd.f32 %v551, %v552
        %v554 = vadd.f32 %v276, %v278
        %v555 = vrot.slane %v554, 4
        %v556 = vadd.f32 %v554, %v555
        %v557 = vrot.slane %v556, 2
        %v558 = vadd.f32 %v556, %v557
        %v559 = vrot.slane %v558, 1
        %v560 = vadd.f32 %v558, %v559
        %v561 = vadd.f32 %v277, %v279
        %v562 = vrot.slane %v561, 4
        %v563 = vadd.f32 %v561, %v562
        %v564 = vrot.slane %v563, 2
        %v565 = vadd.f32 %v563, %v564
        %v566 = vrot.slane %v565, 1
        %v567 = vadd.f32 %v565, %v566
        %v568 = vadd.f32 %v280, %v282
        %v569 = vrot.slane %v568, 4
        %v570 = vadd.f32 %v568, %v569
        %v571 = vrot.slane %v570, 2
        %v572 = vadd.f32 %v570, %v571
        %v573 = vrot.slane %v572, 1
        %v574 = vadd.f32 %v572, %v573
        %v575 = vadd.f32 %v281, %v283
        %v576 = vrot.slane %v575, 4
        %v577 = vadd.f32 %v575, %v576
        %v578 = vrot.slane %v577, 2
        %v579 = vadd.f32 %v577, %v578
        %v580 = vrot.slane %v579, 1
        %v581 = vadd.f32 %v579, %v580
        %v582 = vadd.f32 %v284, %v286
        %v583 = vrot.slane %v582, 4
        %v584 = vadd.f32 %v582, %v583
        %v585 = vrot.slane %v584, 2
        %v586 = vadd.f32 %v584, %v585
        %v587 = vrot.slane %v586, 1
        %v588 = vadd.f32 %v586, %v587
        %v589 = vadd.f32 %v285, %v287
        %v590 = vrot.slane %v589, 4
        %v591 = vadd.f32 %v589, %v590
        %v592 = vrot.slane %v591, 2
        %v593 = vadd.f32 %v591, %v592
        %v594 = vrot.slane %v593, 1
        %v595 = vadd.f32 %v593, %v594
        %v596 = vadd.f32 %v288, %v290
        %v597 = vrot.slane %v596, 4
        %v598 = vadd.f32 %v596, %v597
        %v599 = vrot.slane %v598, 2
        %v600 = vadd.f32 %v598, %v599
        %v601 = vrot.slane %v600, 1
        %v602 = vadd.f32 %v600, %v601
        %v603 = vadd.f32 %v289, %v291
        %v604 = vrot.slane %v603, 4
        %v605 = vadd.f32 %v603, %v604
        %v606 = vrot.slane %v605, 2
        %v607 = vadd.f32 %v605, %v606
        %v608 = vrot.slane %v607, 1
        %v609 = vadd.f32 %v607, %v608
        %v610 = vadd.f32 %v292, %v294
        %v611 = vrot.slane %v610, 4
        %v612 = vadd.f32 %v610, %v611
        %v613 = vrot.slane %v612, 2
        %v614 = vadd.f32 %v612, %v613
        %v615 = vrot.slane %v614, 1
        %v616 = vadd.f32 %v614, %v615
        %v617 = vadd.f32 %v293, %v295
        %v618 = vrot.slane %v617, 4
        %v619 = vadd.f32 %v617, %v618
        %v620 = vrot.slane %v619, 2
        %v621 = vadd.f32 %v619, %v620
        %v622 = vrot.slane %v621, 1
        %v623 = vadd.f32 %v621, %v622
        %v624 = vadd.f32 %v296, %v298
        %v625 = vrot.slane %v624, 4
        %v626 = vadd.f32 %v624, %v625
        %v627 = vrot.slane %v626, 2
        %v628 = vadd.f32 %v626, %v627
        %v629 = vrot.slane %v628, 1
        %v630 = vadd.f32 %v628, %v629
        %v631 = vadd.f32 %v297, %v299
        %v632 = vrot.slane %v631, 4
        %v633 = vadd.f32 %v631, %v632
        %v634 = vrot.slane %v633, 2
        %v635 = vadd.f32 %v633, %v634
        %v636 = vrot.slane %v635, 1
        %v637 = vadd.f32 %v635, %v636
        %v638 = vadd.f32 %v300, %v302
        %v639 = vrot.slane %v638, 4
        %v640 = vadd.f32 %v638, %v639
        %v641 = vrot.slane %v640, 2
        %v642 = vadd.f32 %v640, %v641
        %v643 = vrot.slane %v642, 1
        %v644 = vadd.f32 %v642, %v643
        %v645 = vadd.f32 %v301, %v303
        %v646 = vrot.slane %v645, 4
        %v647 = vadd.f32 %v645, %v646
        %v648 = vrot.slane %v647, 2
        %v649 = vadd.f32 %v647, %v648
        %v650 = vrot.slane %v649, 1
        %v651 = vadd.f32 %v649, %v650
        %v652 = vadd.f32 %v304, %v306
        %v653 = vrot.slane %v652, 4
        %v654 = vadd.f32 %v652, %v653
        %v655 = vrot.slane %v654, 2
        %v656 = vadd.f32 %v654, %v655
        %v657 = vrot.slane %v656, 1
        %v658 = vadd.f32 %v656, %v657
        %v659 = vadd.f32 %v305, %v307
        %v660 = vrot.slane %v659, 4
        %v661 = vadd.f32 %v659, %v660
        %v662 = vrot.slane %v661, 2
        %v663 = vadd.f32 %v661, %v662
        %v664 = vrot.slane %v663, 1
        %v665 = vadd.f32 %v663, %v664
        %v666 = vadd.f32 %v308, %v310
        %v667 = vrot.slane %v666, 4
        %v668 = vadd.f32 %v666, %v667
        %v669 = vrot.slane %v668, 2
        %v670 = vadd.f32 %v668, %v669
        %v671 = vrot.slane %v670, 1
        %v672 = vadd.f32 %v670, %v671
        %v673 = vadd.f32 %v309, %v311
        %v674 = vrot.slane %v673, 4
        %v675 = vadd.f32 %v673, %v674
        %v676 = vrot.slane %v675, 2
        %v677 = vadd.f32 %v675, %v676
        %v678 = vrot.slane %v677, 1
        %v679 = vadd.f32 %v677, %v678
        %v680 = vadd.f32 %v312, %v314
        %v681 = vrot.slane %v680, 4
        %v682 = vadd.f32 %v680, %v681
        %v683 = vrot.slane %v682, 2
        %v684 = vadd.f32 %v682, %v683
        %v685 = vrot.slane %v684, 1
        %v686 = vadd.f32 %v684, %v685
        %v687 = vadd.f32 %v313, %v315
        %v688 = vrot.slane %v687, 4
        %v689 = vadd.f32 %v687, %v688
        %v690 = vrot.slane %v689, 2
        %v691 = vadd.f32 %v689, %v690
        %v692 = vrot.slane %v691, 1
        %v693 = vadd.f32 %v691, %v692
        %v694 = vadd.f32 %v316, %v318
        %v695 = vrot.slane %v694, 4
        %v696 = vadd.f32 %v694, %v695
        %v697 = vrot.slane %v696, 2
        %v698 = vadd.f32 %v696, %v697
        %v699 = vrot.slane %v698, 1
        %v700 = vadd.f32 %v698, %v699
        %v701 = vadd.f32 %v317, %v319
        %v702 = vrot.slane %v701, 4
        %v703 = vadd.f32 %v701, %v702
        %v704 = vrot.slane %v703, 2
        %v705 = vadd.f32 %v703, %v704
        %v706 = vrot.slane %v705, 1
        %v707 = vadd.f32 %v705, %v706
        %v708 = vadd.f32 %v320, %v322
        %v709 = vrot.slane %v708, 4
        %v710 = vadd.f32 %v708, %v709
        %v711 = vrot.slane %v710, 2
        %v712 = vadd.f32 %v710, %v711
        %v713 = vrot.slane %v712, 1
        %v714 = vadd.f32 %v712, %v713
        %v715 = vadd.f32 %v321, %v323
        %v716 = vrot.slane %v715, 4
        %v717 = vadd.f32 %v715, %v716
        %v718 = vrot.slane %v717, 2
        %v719 = vadd.f32 %v717, %v718
        %v720 = vrot.slane %v719, 1
        %v721 = vadd.f32 %v719, %v720
        %v722 = vadd.f32 %v324, %v326
        %v723 = vrot.slane %v722, 4
        %v724 = vadd.f32 %v722, %v723
        %v725 = vrot.slane %v724, 2
        %v726 = vadd.f32 %v724, %v725
        %v727 = vrot.slane %v726, 1
        %v728 = vadd.f32 %v726, %v727
        %v729 = vadd.f32 %v325, %v327
        %v730 = vrot.slane %v729, 4
        %v731 = vadd.f32 %v729, %v730
        %v732 = vrot.slane %v731, 2
        %v733 = vadd.f32 %v731, %v732
        %v734 = vrot.slane %v733, 1
        %v735 = vadd.f32 %v733, %v734
        %v736 = vadd.f32 %v328, %v330
        %v737 = vrot.slane %v736, 4
        %v738 = vadd.f32 %v736, %v737
        %v739 = vrot.slane %v738, 2
        %v740 = vadd.f32 %v738, %v739
        %v741 = vrot.slane %v740, 1
        %v742 = vadd.f32 %v740, %v741
        %v743 = vadd.f32 %v329, %v331
        %v744 = vrot.slane %v743, 4
        %v745 = vadd.f32 %v743, %v744
        %v746 = vrot.slane %v745, 2
        %v747 = vadd.f32 %v745, %v746
        %v748 = vrot.slane %v747, 1
        %v749 = vadd.f32 %v747, %v748
        %v750 = vadd.f32 %v332, %v334
        %v751 = vrot.slane %v750, 4
        %v752 = vadd.f32 %v750, %v751
        %v753 = vrot.slane %v752, 2
        %v754 = vadd.f32 %v752, %v753
        %v755 = vrot.slane %v754, 1
        %v756 = vadd.f32 %v754, %v755
        %v757 = vadd.f32 %v333, %v335
        %v758 = vrot.slane %v757, 4
        %v759 = vadd.f32 %v757, %v758
        %v760 = vrot.slane %v759, 2
        %v761 = vadd.f32 %v759, %v760
        %v762 = vrot.slane %v761, 1
        %v763 = vadd.f32 %v761, %v762
        %v764 = vadd.f32 %v336, %v338
        %v765 = vrot.slane %v764, 4
        %v766 = vadd.f32 %v764, %v765
        %v767 = vrot.slane %v766, 2
        %v768 = vadd.f32 %v766, %v767
        %v769 = vrot.slane %v768, 1
        %v770 = vadd.f32 %v768, %v769
        %v771 = vadd.f32 %v337, %v339
        %v772 = vrot.slane %v771, 4
        %v773 = vadd.f32 %v771, %v772
        %v774 = vrot.slane %v773, 2
        %v775 = vadd.f32 %v773, %v774
        %v776 = vrot.slane %v775, 1
        %v777 = vadd.f32 %v775, %v776
        %v778 = vadd.f32 %v340, %v342
        %v779 = vrot.slane %v778, 4
        %v780 = vadd.f32 %v778, %v779
        %v781 = vrot.slane %v780, 2
        %v782 = vadd.f32 %v780, %v781
        %v783 = vrot.slane %v782, 1
        %v784 = vadd.f32 %v782, %v783
        %v785 = vadd.f32 %v341, %v343
        %v786 = vrot.slane %v785, 4
        %v787 = vadd.f32 %v785, %v786
        %v788 = vrot.slane %v787, 2
        %v789 = vadd.f32 %v787, %v788
        %v790 = vrot.slane %v789, 1
        %v791 = vadd.f32 %v789, %v790
        %v792 = vmax.f32 %v216, %v218
        %v793 = vrot.slane %v792, 4
        %v794 = vmax.f32 %v792, %v793
        %v795 = vrot.slane %v794, 2
        %v796 = vmax.f32 %v794, %v795
        %v797 = vrot.slane %v796, 1
        %v798 = vmax.f32 %v796, %v797
        %v799 = vmax.f32 %v217, %v219
        %v800 = vrot.slane %v799, 4
        %v801 = vmax.f32 %v799, %v800
        %v802 = vrot.slane %v801, 2
        %v803 = vmax.f32 %v801, %v802
        %v804 = vrot.slane %v803, 1
        %v805 = vmax.f32 %v803, %v804
        %v806 = vmax.f32 %v220, %v222
        %v807 = vrot.slane %v806, 4
        %v808 = vmax.f32 %v806, %v807
        %v809 = vrot.slane %v808, 2
        %v810 = vmax.f32 %v808, %v809
        %v811 = vrot.slane %v810, 1
        %v812 = vmax.f32 %v810, %v811
        %v813 = vmax.f32 %v221, %v223
        %v814 = vrot.slane %v813, 4
        %v815 = vmax.f32 %v813, %v814
        %v816 = vrot.slane %v815, 2
        %v817 = vmax.f32 %v815, %v816
        %v818 = vrot.slane %v817, 1
        %v819 = vmax.f32 %v817, %v818
        %v820 = vmax.f32 %v224, %v226
        %v821 = vrot.slane %v820, 4
        %v822 = vmax.f32 %v820, %v821
        %v823 = vrot.slane %v822, 2
        %v824 = vmax.f32 %v822, %v823
        %v825 = vrot.slane %v824, 1
        %v826 = vmax.f32 %v824, %v825
        %v827 = vmax.f32 %v225, %v227
        %v828 = vrot.slane %v827, 4
        %v829 = vmax.f32 %v827, %v828
        %v830 = vrot.slane %v829, 2
        %v831 = vmax.f32 %v829, %v830
        %v832 = vrot.slane %v831, 1
        %v833 = vmax.f32 %v831, %v832
        %v834 = vmax.f32 %v228, %v230
        %v835 = vrot.slane %v834, 4
        %v836 = vmax.f32 %v834, %v835
        %v837 = vrot.slane %v836, 2
        %v838 = vmax.f32 %v836, %v837
        %v839 = vrot.slane %v838, 1
        %v840 = vmax.f32 %v838, %v839
        %v841 = vmax.f32 %v229, %v231
        %v842 = vrot.slane %v841, 4
        %v843 = vmax.f32 %v841, %v842
        %v844 = vrot.slane %v843, 2
        %v845 = vmax.f32 %v843, %v844
        %v846 = vrot.slane %v845, 1
        %v847 = vmax.f32 %v845, %v846
        %v848 = vmax.f32 %v232, %v234
        %v849 = vrot.slane %v848, 4
        %v850 = vmax.f32 %v848, %v849
        %v851 = vrot.slane %v850, 2
        %v852 = vmax.f32 %v850, %v851
        %v853 = vrot.slane %v852, 1
        %v854 = vmax.f32 %v852, %v853
        %v855 = vmax.f32 %v233, %v235
        %v856 = vrot.slane %v855, 4
        %v857 = vmax.f32 %v855, %v856
        %v858 = vrot.slane %v857, 2
        %v859 = vmax.f32 %v857, %v858
        %v860 = vrot.slane %v859, 1
        %v861 = vmax.f32 %v859, %v860
        %v862 = vmax.f32 %v236, %v238
        %v863 = vrot.slane %v862, 4
        %v864 = vmax.f32 %v862, %v863
        %v865 = vrot.slane %v864, 2
        %v866 = vmax.f32 %v864, %v865
        %v867 = vrot.slane %v866, 1
        %v868 = vmax.f32 %v866, %v867
        %v869 = vmax.f32 %v237, %v239
        %v870 = vrot.slane %v869, 4
        %v871 = vmax.f32 %v869, %v870
        %v872 = vrot.slane %v871, 2
        %v873 = vmax.f32 %v871, %v872
        %v874 = vrot.slane %v873, 1
        %v875 = vmax.f32 %v873, %v874
        %v876 = vmax.f32 %v240, %v242
        %v877 = vrot.slane %v876, 4
        %v878 = vmax.f32 %v876, %v877
        %v879 = vrot.slane %v878, 2
        %v880 = vmax.f32 %v878, %v879
        %v881 = vrot.slane %v880, 1
        %v882 = vmax.f32 %v880, %v881
        %v883 = vmax.f32 %v241, %v243
        %v884 = vrot.slane %v883, 4
        %v885 = vmax.f32 %v883, %v884
        %v886 = vrot.slane %v885, 2
        %v887 = vmax.f32 %v885, %v886
        %v888 = vrot.slane %v887, 1
        %v889 = vmax.f32 %v887, %v888
        %v890 = vmax.f32 %v244, %v246
        %v891 = vrot.slane %v890, 4
        %v892 = vmax.f32 %v890, %v891
        %v893 = vrot.slane %v892, 2
        %v894 = vmax.f32 %v892, %v893
        %v895 = vrot.slane %v894, 1
        %v896 = vmax.f32 %v894, %v895
        %v897 = vmax.f32 %v245, %v247
        %v898 = vrot.slane %v897, 4
        %v899 = vmax.f32 %v897, %v898
        %v900 = vrot.slane %v899, 2
        %v901 = vmax.f32 %v899, %v900
        %v902 = vrot.slane %v901, 1
        %v903 = vmax.f32 %v901, %v902
        %v904 = vmax.f32 %v248, %v250
        %v905 = vrot.slane %v904, 4
        %v906 = vmax.f32 %v904, %v905
        %v907 = vrot.slane %v906, 2
        %v908 = vmax.f32 %v906, %v907
        %v909 = vrot.slane %v908, 1
        %v910 = vmax.f32 %v908, %v909
        %v911 = vmax.f32 %v249, %v251
        %v912 = vrot.slane %v911, 4
        %v913 = vmax.f32 %v911, %v912
        %v914 = vrot.slane %v913, 2
        %v915 = vmax.f32 %v913, %v914
        %v916 = vrot.slane %v915, 1
        %v917 = vmax.f32 %v915, %v916
        %v918 = vmax.f32 %v252, %v254
        %v919 = vrot.slane %v918, 4
        %v920 = vmax.f32 %v918, %v919
        %v921 = vrot.slane %v920, 2
        %v922 = vmax.f32 %v920, %v921
        %v923 = vrot.slane %v922, 1
        %v924 = vmax.f32 %v922, %v923
        %v925 = vmax.f32 %v253, %v255
        %v926 = vrot.slane %v925, 4
        %v927 = vmax.f32 %v925, %v926
        %v928 = vrot.slane %v927, 2
        %v929 = vmax.f32 %v927, %v928
        %v930 = vrot.slane %v929, 1
        %v931 = vmax.f32 %v929, %v930
        %v932 = vmax.f32 %v256, %v258
        %v933 = vrot.slane %v932, 4
        %v934 = vmax.f32 %v932, %v933
        %v935 = vrot.slane %v934, 2
        %v936 = vmax.f32 %v934, %v935
        %v937 = vrot.slane %v936, 1
        %v938 = vmax.f32 %v936, %v937
        %v939 = vmax.f32 %v257, %v259
        %v940 = vrot.slane %v939, 4
        %v941 = vmax.f32 %v939, %v940
        %v942 = vrot.slane %v941, 2
        %v943 = vmax.f32 %v941, %v942
        %v944 = vrot.slane %v943, 1
        %v945 = vmax.f32 %v943, %v944
        %v946 = vmax.f32 %v260, %v262
        %v947 = vrot.slane %v946, 4
        %v948 = vmax.f32 %v946, %v947
        %v949 = vrot.slane %v948, 2
        %v950 = vmax.f32 %v948, %v949
        %v951 = vrot.slane %v950, 1
        %v952 = vmax.f32 %v950, %v951
        %v953 = vmax.f32 %v261, %v263
        %v954 = vrot.slane %v953, 4
        %v955 = vmax.f32 %v953, %v954
        %v956 = vrot.slane %v955, 2
        %v957 = vmax.f32 %v955, %v956
        %v958 = vrot.slane %v957, 1
        %v959 = vmax.f32 %v957, %v958
        %v960 = vmax.f32 %v264, %v266
        %v961 = vrot.slane %v960, 4
        %v962 = vmax.f32 %v960, %v961
        %v963 = vrot.slane %v962, 2
        %v964 = vmax.f32 %v962, %v963
        %v965 = vrot.slane %v964, 1
        %v966 = vmax.f32 %v964, %v965
        %v967 = vmax.f32 %v265, %v267
        %v968 = vrot.slane %v967, 4
        %v969 = vmax.f32 %v967, %v968
        %v970 = vrot.slane %v969, 2
        %v971 = vmax.f32 %v969, %v970
        %v972 = vrot.slane %v971, 1
        %v973 = vmax.f32 %v971, %v972
        %v974 = vmax.f32 %v268, %v270
        %v975 = vrot.slane %v974, 4
        %v976 = vmax.f32 %v974, %v975
        %v977 = vrot.slane %v976, 2
        %v978 = vmax.f32 %v976, %v977
        %v979 = vrot.slane %v978, 1
        %v980 = vmax.f32 %v978, %v979
        %v981 = vmax.f32 %v269, %v271
        %v982 = vrot.slane %v981, 4
        %v983 = vmax.f32 %v981, %v982
        %v984 = vrot.slane %v983, 2
        %v985 = vmax.f32 %v983, %v984
        %v986 = vrot.slane %v985, 1
        %v987 = vmax.f32 %v985, %v986
        %v988 = vmax.f32 %v272, %v274
        %v989 = vrot.slane %v988, 4
        %v990 = vmax.f32 %v988, %v989
        %v991 = vrot.slane %v990, 2
        %v992 = vmax.f32 %v990, %v991
        %v993 = vrot.slane %v992, 1
        %v994 = vmax.f32 %v992, %v993
        %v995 = vmax.f32 %v273, %v275
        %v996 = vrot.slane %v995, 4
        %v997 = vmax.f32 %v995, %v996
        %v998 = vrot.slane %v997, 2
        %v999 = vmax.f32 %v997, %v998
        %v1000 = vrot.slane %v999, 1
        %v1001 = vmax.f32 %v999, %v1000
        %v1002 = vmax.f32 %v276, %v278
        %v1003 = vrot.slane %v1002, 4
        %v1004 = vmax.f32 %v1002, %v1003
        %v1005 = vrot.slane %v1004, 2
        %v1006 = vmax.f32 %v1004, %v1005
        %v1007 = vrot.slane %v1006, 1
        %v1008 = vmax.f32 %v1006, %v1007
        %v1009 = vmax.f32 %v277, %v279
        %v1010 = vrot.slane %v1009, 4
        %v1011 = vmax.f32 %v1009, %v1010
        %v1012 = vrot.slane %v1011, 2
        %v1013 = vmax.f32 %v1011, %v1012
        %v1014 = vrot.slane %v1013, 1
        %v1015 = vmax.f32 %v1013, %v1014
        %v1016 = vmax.f32 %v280, %v282
        %v1017 = vrot.slane %v1016, 4
        %v1018 = vmax.f32 %v1016, %v1017
        %v1019 = vrot.slane %v1018, 2
        %v1020 = vmax.f32 %v1018, %v1019
        %v1021 = vrot.slane %v1020, 1
        %v1022 = vmax.f32 %v1020, %v1021
        %v1023 = vmax.f32 %v281, %v283
        %v1024 = vrot.slane %v1023, 4
        %v1025 = vmax.f32 %v1023, %v1024
        %v1026 = vrot.slane %v1025, 2
        %v1027 = vmax.f32 %v1025, %v1026
        %v1028 = vrot.slane %v1027, 1
        %v1029 = vmax.f32 %v1027, %v1028
        %v1030 = vmax.f32 %v284, %v286
        %v1031 = vrot.slane %v1030, 4
        %v1032 = vmax.f32 %v1030, %v1031
        %v1033 = vrot.slane %v1032, 2
        %v1034 = vmax.f32 %v1032, %v1033
        %v1035 = vrot.slane %v1034, 1
        %v1036 = vmax.f32 %v1034, %v1035
        %v1037 = vmax.f32 %v285, %v287
        %v1038 = vrot.slane %v1037, 4
        %v1039 = vmax.f32 %v1037, %v1038
        %v1040 = vrot.slane %v1039, 2
        %v1041 = vmax.f32 %v1039, %v1040
        %v1042 = vrot.slane %v1041, 1
        %v1043 = vmax.f32 %v1041, %v1042
        %v1044 = vmax.f32 %v288, %v290
        %v1045 = vrot.slane %v1044, 4
        %v1046 = vmax.f32 %v1044, %v1045
        %v1047 = vrot.slane %v1046, 2
        %v1048 = vmax.f32 %v1046, %v1047
        %v1049 = vrot.slane %v1048, 1
        %v1050 = vmax.f32 %v1048, %v1049
        %v1051 = vmax.f32 %v289, %v291
        %v1052 = vrot.slane %v1051, 4
        %v1053 = vmax.f32 %v1051, %v1052
        %v1054 = vrot.slane %v1053, 2
        %v1055 = vmax.f32 %v1053, %v1054
        %v1056 = vrot.slane %v1055, 1
        %v1057 = vmax.f32 %v1055, %v1056
        %v1058 = vmax.f32 %v292, %v294
        %v1059 = vrot.slane %v1058, 4
        %v1060 = vmax.f32 %v1058, %v1059
        %v1061 = vrot.slane %v1060, 2
        %v1062 = vmax.f32 %v1060, %v1061
        %v1063 = vrot.slane %v1062, 1
        %v1064 = vmax.f32 %v1062, %v1063
        %v1065 = vmax.f32 %v293, %v295
        %v1066 = vrot.slane %v1065, 4
        %v1067 = vmax.f32 %v1065, %v1066
        %v1068 = vrot.slane %v1067, 2
        %v1069 = vmax.f32 %v1067, %v1068
        %v1070 = vrot.slane %v1069, 1
        %v1071 = vmax.f32 %v1069, %v1070
        %v1072 = vmax.f32 %v296, %v298
        %v1073 = vrot.slane %v1072, 4
        %v1074 = vmax.f32 %v1072, %v1073
        %v1075 = vrot.slane %v1074, 2
        %v1076 = vmax.f32 %v1074, %v1075
        %v1077 = vrot.slane %v1076, 1
        %v1078 = vmax.f32 %v1076, %v1077
        %v1079 = vmax.f32 %v297, %v299
        %v1080 = vrot.slane %v1079, 4
        %v1081 = vmax.f32 %v1079, %v1080
        %v1082 = vrot.slane %v1081, 2
        %v1083 = vmax.f32 %v1081, %v1082
        %v1084 = vrot.slane %v1083, 1
        %v1085 = vmax.f32 %v1083, %v1084
        %v1086 = vmax.f32 %v300, %v302
        %v1087 = vrot.slane %v1086, 4
        %v1088 = vmax.f32 %v1086, %v1087
        %v1089 = vrot.slane %v1088, 2
        %v1090 = vmax.f32 %v1088, %v1089
        %v1091 = vrot.slane %v1090, 1
        %v1092 = vmax.f32 %v1090, %v1091
        %v1093 = vmax.f32 %v301, %v303
        %v1094 = vrot.slane %v1093, 4
        %v1095 = vmax.f32 %v1093, %v1094
        %v1096 = vrot.slane %v1095, 2
        %v1097 = vmax.f32 %v1095, %v1096
        %v1098 = vrot.slane %v1097, 1
        %v1099 = vmax.f32 %v1097, %v1098
        %v1100 = vmax.f32 %v304, %v306
        %v1101 = vrot.slane %v1100, 4
        %v1102 = vmax.f32 %v1100, %v1101
        %v1103 = vrot.slane %v1102, 2
        %v1104 = vmax.f32 %v1102, %v1103
        %v1105 = vrot.slane %v1104, 1
        %v1106 = vmax.f32 %v1104, %v1105
        %v1107 = vmax.f32 %v305, %v307
        %v1108 = vrot.slane %v1107, 4
        %v1109 = vmax.f32 %v1107, %v1108
        %v1110 = vrot.slane %v1109, 2
        %v1111 = vmax.f32 %v1109, %v1110
        %v1112 = vrot.slane %v1111, 1
        %v1113 = vmax.f32 %v1111, %v1112
        %v1114 = vmax.f32 %v308, %v310
        %v1115 = vrot.slane %v1114, 4
        %v1116 = vmax.f32 %v1114, %v1115
        %v1117 = vrot.slane %v1116, 2
        %v1118 = vmax.f32 %v1116, %v1117
        %v1119 = vrot.slane %v1118, 1
        %v1120 = vmax.f32 %v1118, %v1119
        %v1121 = vmax.f32 %v309, %v311
        %v1122 = vrot.slane %v1121, 4
        %v1123 = vmax.f32 %v1121, %v1122
        %v1124 = vrot.slane %v1123, 2
        %v1125 = vmax.f32 %v1123, %v1124
        %v1126 = vrot.slane %v1125, 1
        %v1127 = vmax.f32 %v1125, %v1126
        %v1128 = vmax.f32 %v312, %v314
        %v1129 = vrot.slane %v1128, 4
        %v1130 = vmax.f32 %v1128, %v1129
        %v1131 = vrot.slane %v1130, 2
        %v1132 = vmax.f32 %v1130, %v1131
        %v1133 = vrot.slane %v1132, 1
        %v1134 = vmax.f32 %v1132, %v1133
        %v1135 = vmax.f32 %v313, %v315
        %v1136 = vrot.slane %v1135, 4
        %v1137 = vmax.f32 %v1135, %v1136
        %v1138 = vrot.slane %v1137, 2
        %v1139 = vmax.f32 %v1137, %v1138
        %v1140 = vrot.slane %v1139, 1
        %v1141 = vmax.f32 %v1139, %v1140
        %v1142 = vmax.f32 %v316, %v318
        %v1143 = vrot.slane %v1142, 4
        %v1144 = vmax.f32 %v1142, %v1143
        %v1145 = vrot.slane %v1144, 2
        %v1146 = vmax.f32 %v1144, %v1145
        %v1147 = vrot.slane %v1146, 1
        %v1148 = vmax.f32 %v1146, %v1147
        %v1149 = vmax.f32 %v317, %v319
        %v1150 = vrot.slane %v1149, 4
        %v1151 = vmax.f32 %v1149, %v1150
        %v1152 = vrot.slane %v1151, 2
        %v1153 = vmax.f32 %v1151, %v1152
        %v1154 = vrot.slane %v1153, 1
        %v1155 = vmax.f32 %v1153, %v1154
        %v1156 = vmax.f32 %v320, %v322
        %v1157 = vrot.slane %v1156, 4
        %v1158 = vmax.f32 %v1156, %v1157
        %v1159 = vrot.slane %v1158, 2
        %v1160 = vmax.f32 %v1158, %v1159
        %v1161 = vrot.slane %v1160, 1
        %v1162 = vmax.f32 %v1160, %v1161
        %v1163 = vmax.f32 %v321, %v323
        %v1164 = vrot.slane %v1163, 4
        %v1165 = vmax.f32 %v1163, %v1164
        %v1166 = vrot.slane %v1165, 2
        %v1167 = vmax.f32 %v1165, %v1166
        %v1168 = vrot.slane %v1167, 1
        %v1169 = vmax.f32 %v1167, %v1168
        %v1170 = vmax.f32 %v324, %v326
        %v1171 = vrot.slane %v1170, 4
        %v1172 = vmax.f32 %v1170, %v1171
        %v1173 = vrot.slane %v1172, 2
        %v1174 = vmax.f32 %v1172, %v1173
        %v1175 = vrot.slane %v1174, 1
        %v1176 = vmax.f32 %v1174, %v1175
        %v1177 = vmax.f32 %v325, %v327
        %v1178 = vrot.slane %v1177, 4
        %v1179 = vmax.f32 %v1177, %v1178
        %v1180 = vrot.slane %v1179, 2
        %v1181 = vmax.f32 %v1179, %v1180
        %v1182 = vrot.slane %v1181, 1
        %v1183 = vmax.f32 %v1181, %v1182
        %v1184 = vmax.f32 %v328, %v330
        %v1185 = vrot.slane %v1184, 4
        %v1186 = vmax.f32 %v1184, %v1185
        %v1187 = vrot.slane %v1186, 2
        %v1188 = vmax.f32 %v1186, %v1187
        %v1189 = vrot.slane %v1188, 1
        %v1190 = vmax.f32 %v1188, %v1189
        %v1191 = vmax.f32 %v329, %v331
        %v1192 = vrot.slane %v1191, 4
        %v1193 = vmax.f32 %v1191, %v1192
        %v1194 = vrot.slane %v1193, 2
        %v1195 = vmax.f32 %v1193, %v1194
        %v1196 = vrot.slane %v1195, 1
        %v1197 = vmax.f32 %v1195, %v1196
        %v1198 = vmax.f32 %v332, %v334
        %v1199 = vrot.slane %v1198, 4
        %v1200 = vmax.f32 %v1198, %v1199
        %v1201 = vrot.slane %v1200, 2
        %v1202 = vmax.f32 %v1200, %v1201
        %v1203 = vrot.slane %v1202, 1
        %v1204 = vmax.f32 %v1202, %v1203
        %v1205 = vmax.f32 %v333, %v335
        %v1206 = vrot.slane %v1205, 4
        %v1207 = vmax.f32 %v1205, %v1206
        %v1208 = vrot.slane %v1207, 2
        %v1209 = vmax.f32 %v1207, %v1208
        %v1210 = vrot.slane %v1209, 1
        %v1211 = vmax.f32 %v1209, %v1210
        %v1212 = vmax.f32 %v336, %v338
        %v1213 = vrot.slane %v1212, 4
        %v1214 = vmax.f32 %v1212, %v1213
        %v1215 = vrot.slane %v1214, 2
        %v1216 = vmax.f32 %v1214, %v1215
        %v1217 = vrot.slane %v1216, 1
        %v1218 = vmax.f32 %v1216, %v1217
        %v1219 = vmax.f32 %v337, %v339
        %v1220 = vrot.slane %v1219, 4
        %v1221 = vmax.f32 %v1219, %v1220
        %v1222 = vrot.slane %v1221, 2
        %v1223 = vmax.f32 %v1221, %v1222
        %v1224 = vrot.slane %v1223, 1
        %v1225 = vmax.f32 %v1223, %v1224
        %v1226 = vmax.f32 %v340, %v342
        %v1227 = vrot.slane %v1226, 4
        %v1228 = vmax.f32 %v1226, %v1227
        %v1229 = vrot.slane %v1228, 2
        %v1230 = vmax.f32 %v1228, %v1229
        %v1231 = vrot.slane %v1230, 1
        %v1232 = vmax.f32 %v1230, %v1231
        %v1233 = vmax.f32 %v341, %v343
        %v1234 = vrot.slane %v1233, 4
        %v1235 = vmax.f32 %v1233, %v1234
        %v1236 = vrot.slane %v1235, 2
        %v1237 = vmax.f32 %v1235, %v1236
        %v1238 = vrot.slane %v1237, 1
        %v1239 = vmax.f32 %v1237, %v1238
        %v1240 = vmul.f32 %v350, 0.0625
        %v1241 = vmul.f32 %v357, 0.0625
        %v1242 = vmul.f32 %v364, 0.0625
        %v1243 = vmul.f32 %v371, 0.0625
        %v1244 = vmul.f32 %v378, 0.0625
        %v1245 = vmul.f32 %v385, 0.0625
        %v1246 = vmul.f32 %v392, 0.0625
        %v1247 = vmul.f32 %v399, 0.0625
        %v1248 = vmul.f32 %v406, 0.0625
        %v1249 = vmul.f32 %v413, 0.0625
        %v1250 = vmul.f32 %v420, 0.0625
        %v1251 = vmul.f32 %v427, 0.0625
        %v1252 = vmul.f32 %v434, 0.0625
        %v1253 = vmul.f32 %v441, 0.0625
        %v1254 = vmul.f32 %v448, 0.0625
        %v1255 = vmul.f32 %v455, 0.0625
        %v1256 = vmul.f32 %v462, 0.0625
        %v1257 = vmul.f32 %v469, 0.0625
        %v1258 = vmul.f32 %v476, 0.0625
        %v1259 = vmul.f32 %v483, 0.0625
        %v1260 = vmul.f32 %v490, 0.0625
        %v1261 = vmul.f32 %v497, 0.0625
        %v1262 = vmul.f32 %v504, 0.0625
        %v1263 = vmul.f32 %v511, 0.0625
        %v1264 = vmul.f32 %v518, 0.0625
        %v1265 = vmul.f32 %v525, 0.0625
        %v1266 = vmul.f32 %v532, 0.0625
        %v1267 = vmul.f32 %v539, 0.0625
        %v1268 = vmul.f32 %v546, 0.0625
        %v1269 = vmul.f32 %v553, 0.0625
        %v1270 = vmul.f32 %v560, 0.0625
        %v1271 = vmul.f32 %v567, 0.0625
        %v1272 = vmul.f32 %v574, 0.0625
        %v1273 = vmul.f32 %v581, 0.0625
        %v1274 = vmul.f32 %v588, 0.0625
        %v1275 = vmul.f32 %v595, 0.0625
        %v1276 = vmul.f32 %v602, 0.0625
        %v1277 = vmul.f32 %v609, 0.0625
        %v1278 = vmul.f32 %v616, 0.0625
        %v1279 = vmul.f32 %v623, 0.0625
        %v1280 = vmul.f32 %v630, 0.0625
        %v1281 = vmul.f32 %v637, 0.0625
        %v1282 = vmul.f32 %v644, 0.0625
        %v1283 = vmul.f32 %v651, 0.0625
        %v1284 = vmul.f32 %v658, 0.0625
        %v1285 = vmul.f32 %v665, 0.0625
        %v1286 = vmul.f32 %v672, 0.0625
        %v1287 = vmul.f32 %v679, 0.0625
        %v1288 = vmul.f32 %v686, 0.0625
        %v1289 = vmul.f32 %v693, 0.0625
        %v1290 = vmul.f32 %v700, 0.0625
        %v1291 = vmul.f32 %v707, 0.0625
        %v1292 = vmul.f32 %v714, 0.0625
        %v1293 = vmul.f32 %v721, 0.0625
        %v1294 = vmul.f32 %v728, 0.0625
        %v1295 = vmul.f32 %v735, 0.0625
        %v1296 = vmul.f32 %v742, 0.0625
        %v1297 = vmul.f32 %v749, 0.0625
        %v1298 = vmul.f32 %v756, 0.0625
        %v1299 = vmul.f32 %v763, 0.0625
        %v1300 = vmul.f32 %v770, 0.0625
        %v1301 = vmul.f32 %v777, 0.0625
        %v1302 = vmul.f32 %v784, 0.0625
        %v1303 = vmul.f32 %v791, 0.0625
        %vm1368 = vcmask 1041409
        %v1369 = vsel %vm1368, %v1242, %v1240
        %vm1370 = vcmask 1042434
        %v1371 = vsel %vm1370, %v1244, %v1369
        %vm1372 = vcmask 1043459
        %v1373 = vsel %vm1372, %v1246, %v1371
        %vm1374 = vcmask 1044484
        %v1375 = vsel %vm1374, %v1248, %v1373
        %vm1376 = vcmask 1045509
        %v1377 = vsel %vm1376, %v1250, %v1375
        %vm1378 = vcmask 1046534
        %v1379 = vsel %vm1378, %v1252, %v1377
        %vm1380 = vcmask 1047559
        %v1381 = vsel %vm1380, %v1254, %v1379
        %v1382 = vsel %vm1368, %v1243, %v1241
        %v1383 = vsel %vm1370, %v1245, %v1382
        %v1384 = vsel %vm1372, %v1247, %v1383
        %v1385 = vsel %vm1374, %v1249, %v1384
        %v1386 = vsel %vm1376, %v1251, %v1385
        %v1387 = vsel %vm1378, %v1253, %v1386
        %v1388 = vsel %vm1380, %v1255, %v1387
        %v1389 = vsel %vm1368, %v1258, %v1256
        %v1390 = vsel %vm1370, %v1260, %v1389
        %v1391 = vsel %vm1372, %v1262, %v1390
        %v1392 = vsel %vm1374, %v1264, %v1391
        %v1393 = vsel %vm1376, %v1266, %v1392
        %v1394 = vsel %vm1378, %v1268, %v1393
        %v1395 = vsel %vm1380, %v1270, %v1394
        %v1396 = vsel %vm1368, %v1259, %v1257
        %v1397 = vsel %vm1370, %v1261, %v1396
        %v1398 = vsel %vm1372, %v1263, %v1397
        %v1399 = vsel %vm1374, %v1265, %v1398
        %v1400 = vsel %vm1376, %v1267, %v1399
        %v1401 = vsel %vm1378, %v1269, %v1400
        %v1402 = vsel %vm1380, %v1271, %v1401
        %v1403 = vsel %vm1368, %v1274, %v1272
        %v1404 = vsel %vm1370, %v1276, %v1403
        %v1405 = vsel %vm1372, %v1278, %v1404
        %v1406 = vsel %vm1374, %v1280, %v1405
        %v1407 = vsel %vm1376, %v1282, %v1406
        %v1408 = vsel %vm1378, %v1284, %v1407
        %v1409 = vsel %vm1380, %v1286, %v1408
        %v1410 = vsel %vm1368, %v1275, %v1273
        %v1411 = vsel %vm1370, %v1277, %v1410
        %v1412 = vsel %vm1372, %v1279, %v1411
        %v1413 = vsel %vm1374, %v1281, %v1412
        %v1414 = vsel %vm1376, %v1283, %v1413
        %v1415 = vsel %vm1378, %v1285, %v1414
        %v1416 = vsel %vm1380, %v1287, %v1415
        %v1417 = vsel %vm1368, %v1290, %v1288
        %v1418 = vsel %vm1370, %v1292, %v1417
        %v1419 = vsel %vm1372, %v1294, %v1418
        %v1420 = vsel %vm1374, %v1296, %v1419
        %v1421 = vsel %vm1376, %v1298, %v1420
        %v1422 = vsel %vm1378, %v1300, %v1421
        %v1423 = vsel %vm1380, %v1302, %v1422
        %v1424 = vsel %vm1368, %v1291, %v1289
        %v1425 = vsel %vm1370, %v1293, %v1424
        %v1426 = vsel %vm1372, %v1295, %v1425
        %v1427 = vsel %vm1374, %v1297, %v1426
        %v1428 = vsel %vm1376, %v1299, %v1427
        %v1429 = vsel %vm1378, %v1301, %v1428
        %v1430 = vsel %vm1380, %v1303, %v1429
        %vm1439 = vcmask 261120
        %v1441 = vsel %vm1439, %v211, 0
        %1443 = vmatpush.msra.mxu0 0.0
        %1444 = vmatpush.msra.mxu0 0.0
        %1445 = vmatpush.msra.mxu0 0.0
        %1446 = vmatpush.msra.mxu0 0.0
        %1447 = vmatpush.msra.mxu0 0.0
        %1448 = vmatpush.msra.mxu0 0.0
        %1449 = vmatpush.msra.mxu0 0.0
        %1450 = vmatpush.msra.mxu0 0.0
        %1451 = vmatpush.msra.mxu0 0.0
        %1452 = vmatpush.msra.mxu0 0.0
        %1453 = vmatpush.msra.mxu0 0.0
        %1454 = vmatpush.msra.mxu0 0.0
        %1455 = vmatpush.msra.mxu0 %v1423
        %1456 = vmatpush.msra.mxu0 %v1409
        %1457 = vmatpush.msra.mxu0 %v1395
        %1458 = vmatpush.msra.mxu0 %v1381
        %1459 = vmatmul.f32.gmra.mxu0 %v1441
        %v1460 = vpop.f32.mrf.mxu0
        %v1461 = vadd.f32 0.0, %v1460
        %1462 = vdwg.mxu0
        %1463 = vmatpush.msra.mxu0 0.0
        %1464 = vmatpush.msra.mxu0 0.0
        %1465 = vmatpush.msra.mxu0 0.0
        %1466 = vmatpush.msra.mxu0 0.0
        %1467 = vmatpush.msra.mxu0 0.0
        %1468 = vmatpush.msra.mxu0 0.0
        %1469 = vmatpush.msra.mxu0 0.0
        %1470 = vmatpush.msra.mxu0 0.0
        %1471 = vmatpush.msra.mxu0 0.0
        %1472 = vmatpush.msra.mxu0 0.0
        %1473 = vmatpush.msra.mxu0 0.0
        %1474 = vmatpush.msra.mxu0 0.0
        %1475 = vmatpush.msra.mxu0 %v1430
        %1476 = vmatpush.msra.mxu0 %v1416
        %1477 = vmatpush.msra.mxu0 %v1402
        %1478 = vmatpush.msra.mxu0 %v1388
        %1479 = vmatmul.f32.gmra.mxu0 %v1441
        %v1480 = vpop.f32.mrf.mxu0
        %v1481 = vadd.f32 0.0, %v1480
        %1482 = vdwg.mxu0
        %v1483 = vmax.f32 %v1461, 0.0
        %v1484 = vmax.f32 %v1481, 0.0
        %1486 = vset.pattern.permute.xlu0 0
        %1487 = vperm.xlu0 %1486, %v212
        %v1488 = vpop.permute.xlu0 %1487
        %1491 = vset.pattern.permute.xlu0 0
        %1492 = vperm.xlu0 %1491, %v213
        %v1493 = vpop.permute.xlu0 %1492
        %1496 = vset.pattern.permute.xlu0 0
        %1497 = vperm.xlu0 %1496, %v214
        %v1498 = vpop.permute.xlu0 %1497
        %1501 = vset.pattern.permute.xlu0 0
        %1502 = vperm.xlu0 %1501, %v215
        %v1503 = vpop.permute.xlu0 %1502
        %v1505 = vperm.slane %v1483, 0
        %v1506 = vperm.slane %v1484, 0
        %v1507 = vmul.f32 %v1488, %v1505
        %v1508 = vmul.f32 %v1488, %v1506
        %v1509 = vmul.f32 %v1493, %v1505
        %v1510 = vmul.f32 %v1493, %v1506
        %v1511 = vmul.f32 %v1498, %v1505
        %v1512 = vmul.f32 %v1498, %v1506
        %v1513 = vmul.f32 %v1503, %v1505
        %v1514 = vmul.f32 %v1503, %v1506
        %1515 = vset.pattern.permute.xlu0 1
        %1516 = vperm.xlu0 %1515, %v212
        %v1517 = vpop.permute.xlu0 %1516
        %1519 = vset.pattern.permute.xlu0 1
        %1520 = vperm.xlu0 %1519, %v213
        %v1521 = vpop.permute.xlu0 %1520
        %1523 = vset.pattern.permute.xlu0 1
        %1524 = vperm.xlu0 %1523, %v214
        %v1525 = vpop.permute.xlu0 %1524
        %1527 = vset.pattern.permute.xlu0 1
        %1528 = vperm.xlu0 %1527, %v215
        %v1529 = vpop.permute.xlu0 %1528
        %v1531 = vperm.slane %v1483, 1
        %v1532 = vperm.slane %v1484, 1
        %v1533 = vmul.f32 %v1517, %v1531
        %v1534 = vmul.f32 %v1517, %v1532
        %v1535 = vmul.f32 %v1521, %v1531
        %v1536 = vmul.f32 %v1521, %v1532
        %v1537 = vmul.f32 %v1525, %v1531
        %v1538 = vmul.f32 %v1525, %v1532
        %v1539 = vmul.f32 %v1529, %v1531
        %v1540 = vmul.f32 %v1529, %v1532
        %v1541 = vadd.f32 %v1507, %v1533
        %v1542 = vadd.f32 %v1508, %v1534
        %v1543 = vadd.f32 %v1509, %v1535
        %v1544 = vadd.f32 %v1510, %v1536
        %v1545 = vadd.f32 %v1511, %v1537
        %v1546 = vadd.f32 %v1512, %v1538
        %v1547 = vadd.f32 %v1513, %v1539
        %v1548 = vadd.f32 %v1514, %v1540
        %v1613 = vsel %vm1368, %v812, %v798
        %v1614 = vsel %vm1370, %v826, %v1613
        %v1615 = vsel %vm1372, %v840, %v1614
        %v1616 = vsel %vm1374, %v854, %v1615
        %v1617 = vsel %vm1376, %v868, %v1616
        %v1618 = vsel %vm1378, %v882, %v1617
        %v1619 = vsel %vm1380, %v896, %v1618
        %v1620 = vsel %vm1368, %v819, %v805
        %v1621 = vsel %vm1370, %v833, %v1620
        %v1622 = vsel %vm1372, %v847, %v1621
        %v1623 = vsel %vm1374, %v861, %v1622
        %v1624 = vsel %vm1376, %v875, %v1623
        %v1625 = vsel %vm1378, %v889, %v1624
        %v1626 = vsel %vm1380, %v903, %v1625
        %v1627 = vsel %vm1368, %v924, %v910
        %v1628 = vsel %vm1370, %v938, %v1627
        %v1629 = vsel %vm1372, %v952, %v1628
        %v1630 = vsel %vm1374, %v966, %v1629
        %v1631 = vsel %vm1376, %v980, %v1630
        %v1632 = vsel %vm1378, %v994, %v1631
        %v1633 = vsel %vm1380, %v1008, %v1632
        %v1634 = vsel %vm1368, %v931, %v917
        %v1635 = vsel %vm1370, %v945, %v1634
        %v1636 = vsel %vm1372, %v959, %v1635
        %v1637 = vsel %vm1374, %v973, %v1636
        %v1638 = vsel %vm1376, %v987, %v1637
        %v1639 = vsel %vm1378, %v1001, %v1638
        %v1640 = vsel %vm1380, %v1015, %v1639
        %v1641 = vsel %vm1368, %v1036, %v1022
        %v1642 = vsel %vm1370, %v1050, %v1641
        %v1643 = vsel %vm1372, %v1064, %v1642
        %v1644 = vsel %vm1374, %v1078, %v1643
        %v1645 = vsel %vm1376, %v1092, %v1644
        %v1646 = vsel %vm1378, %v1106, %v1645
        %v1647 = vsel %vm1380, %v1120, %v1646
        %v1648 = vsel %vm1368, %v1043, %v1029
        %v1649 = vsel %vm1370, %v1057, %v1648
        %v1650 = vsel %vm1372, %v1071, %v1649
        %v1651 = vsel %vm1374, %v1085, %v1650
        %v1652 = vsel %vm1376, %v1099, %v1651
        %v1653 = vsel %vm1378, %v1113, %v1652
        %v1654 = vsel %vm1380, %v1127, %v1653
        %v1655 = vsel %vm1368, %v1148, %v1134
        %v1656 = vsel %vm1370, %v1162, %v1655
        %v1657 = vsel %vm1372, %v1176, %v1656
        %v1658 = vsel %vm1374, %v1190, %v1657
        %v1659 = vsel %vm1376, %v1204, %v1658
        %v1660 = vsel %vm1378, %v1218, %v1659
        %v1661 = vsel %vm1380, %v1232, %v1660
        %v1662 = vsel %vm1368, %v1155, %v1141
        %v1663 = vsel %vm1370, %v1169, %v1662
        %v1664 = vsel %vm1372, %v1183, %v1663
        %v1665 = vsel %vm1374, %v1197, %v1664
        %v1666 = vsel %vm1376, %v1211, %v1665
        %v1667 = vsel %vm1378, %v1225, %v1666
        %v1668 = vsel %vm1380, %v1239, %v1667
        %1677 = vmatpush.msra.mxu0 0.0
        %1678 = vmatpush.msra.mxu0 0.0
        %1679 = vmatpush.msra.mxu0 0.0
        %1680 = vmatpush.msra.mxu0 0.0
        %1681 = vmatpush.msra.mxu0 0.0
        %1682 = vmatpush.msra.mxu0 0.0
        %1683 = vmatpush.msra.mxu0 0.0
        %1684 = vmatpush.msra.mxu0 0.0
        %1685 = vmatpush.msra.mxu0 0.0
        %1686 = vmatpush.msra.mxu0 0.0
        %1687 = vmatpush.msra.mxu0 0.0
        %1688 = vmatpush.msra.mxu0 0.0
        %1689 = vmatpush.msra.mxu0 %v1661
        %1690 = vmatpush.msra.mxu0 %v1647
        %1691 = vmatpush.msra.mxu0 %v1633
        %1692 = vmatpush.msra.mxu0 %v1619
        %1693 = vmatmul.f32.gmra.mxu0 %v1441
        %v1694 = vpop.f32.mrf.mxu0
        %v1695 = vadd.f32 0.0, %v1694
        %1696 = vdwg.mxu0
        %1697 = vmatpush.msra.mxu0 0.0
        %1698 = vmatpush.msra.mxu0 0.0
        %1699 = vmatpush.msra.mxu0 0.0
        %1700 = vmatpush.msra.mxu0 0.0
        %1701 = vmatpush.msra.mxu0 0.0
        %1702 = vmatpush.msra.mxu0 0.0
        %1703 = vmatpush.msra.mxu0 0.0
        %1704 = vmatpush.msra.mxu0 0.0
        %1705 = vmatpush.msra.mxu0 0.0
        %1706 = vmatpush.msra.mxu0 0.0
        %1707 = vmatpush.msra.mxu0 0.0
        %1708 = vmatpush.msra.mxu0 0.0
        %1709 = vmatpush.msra.mxu0 %v1668
        %1710 = vmatpush.msra.mxu0 %v1654
        %1711 = vmatpush.msra.mxu0 %v1640
        %1712 = vmatpush.msra.mxu0 %v1626
        %1713 = vmatmul.f32.gmra.mxu0 %v1441
        %v1714 = vpop.f32.mrf.mxu0
        %v1715 = vadd.f32 0.0, %v1714
        %1716 = vdwg.mxu0
        %v1717 = vmax.f32 %v1695, 0.0
        %v1718 = vmax.f32 %v1715, 0.0
        %v1719 = vperm.slane %v1717, 0
        %v1720 = vperm.slane %v1718, 0
        %v1721 = vmul.f32 %v1488, %v1719
        %v1722 = vmul.f32 %v1488, %v1720
        %v1723 = vmul.f32 %v1493, %v1719
        %v1724 = vmul.f32 %v1493, %v1720
        %v1725 = vmul.f32 %v1498, %v1719
        %v1726 = vmul.f32 %v1498, %v1720
        %v1727 = vmul.f32 %v1503, %v1719
        %v1728 = vmul.f32 %v1503, %v1720
        %v1729 = vperm.slane %v1717, 1
        %v1730 = vperm.slane %v1718, 1
        %v1731 = vmul.f32 %v1517, %v1729
        %v1732 = vmul.f32 %v1517, %v1730
        %v1733 = vmul.f32 %v1521, %v1729
        %v1734 = vmul.f32 %v1521, %v1730
        %v1735 = vmul.f32 %v1525, %v1729
        %v1736 = vmul.f32 %v1525, %v1730
        %v1737 = vmul.f32 %v1529, %v1729
        %v1738 = vmul.f32 %v1529, %v1730
        %v1739 = vadd.f32 %v1721, %v1731
        %v1740 = vadd.f32 %v1722, %v1732
        %v1741 = vadd.f32 %v1723, %v1733
        %v1742 = vadd.f32 %v1724, %v1734
        %v1743 = vadd.f32 %v1725, %v1735
        %v1744 = vadd.f32 %v1726, %v1736
        %v1745 = vadd.f32 %v1727, %v1737
        %v1746 = vadd.f32 %v1728, %v1738
        %v1747 = vadd.f32 %v1541, %v1739
        %v1748 = vadd.f32 %v1542, %v1740
        %v1749 = vadd.f32 %v1543, %v1741
        %v1750 = vadd.f32 %v1544, %v1742
        %v1751 = vadd.f32 %v1545, %v1743
        %v1752 = vadd.f32 %v1546, %v1744
        %v1753 = vadd.f32 %v1547, %v1745
        %v1754 = vadd.f32 %v1548, %v1746
        %v1755 = vxor.u32 %v1747, 2147483648
        %v1756 = vxor.u32 %v1748, 2147483648
        %v1757 = vxor.u32 %v1749, 2147483648
        %v1758 = vxor.u32 %v1750, 2147483648
        %v1759 = vxor.u32 %v1751, 2147483648
        %v1760 = vxor.u32 %v1752, 2147483648
        %v1761 = vxor.u32 %v1753, 2147483648
        %v1762 = vxor.u32 %v1754, 2147483648
        %v1763 = vmul.f32 %v1755, 1.442695
        %v1764 = vpow.pop %v1763
        %v1765 = vmul.f32 %v1756, 1.442695
        %v1766 = vpow.pop %v1765
        %v1767 = vmul.f32 %v1757, 1.442695
        %v1768 = vpow.pop %v1767
        %v1769 = vmul.f32 %v1758, 1.442695
        %v1770 = vpow.pop %v1769
        %v1771 = vmul.f32 %v1759, 1.442695
        %v1772 = vpow.pop %v1771
        %v1773 = vmul.f32 %v1760, 1.442695
        %v1774 = vpow.pop %v1773
        %v1775 = vmul.f32 %v1761, 1.442695
        %v1776 = vpow.pop %v1775
        %v1777 = vmul.f32 %v1762, 1.442695
        %v1778 = vpow.pop %v1777
        %v1779 = vadd.f32 %v1764, 1.0
        %v1780 = vadd.f32 %v1766, 1.0
        %v1781 = vadd.f32 %v1768, 1.0
        %v1782 = vadd.f32 %v1770, 1.0
        %v1783 = vadd.f32 %v1772, 1.0
        %v1784 = vadd.f32 %v1774, 1.0
        %v1785 = vadd.f32 %v1776, 1.0
        %v1786 = vadd.f32 %v1778, 1.0
        %v1787 = vrcp.pop %v1779
        %v1788 = vmul.f32 %v1779, %v1787
        %v1789 = vsub.f32 1.0, %v1788
        %v1790 = vmul.f32 %v1787, %v1789
        %v1791 = vadd.f32 %v1787, %v1790
        %vm1792 = vweird.f32 %v1779
        %vm1793 = vweird.f32 %v1787
        %vm1794 = vmor %vm1792, %vm1793
        %v1795 = vsel %vm1794, %v1787, %v1791
        %v1796 = vand.u32 2147483647, %v1779
        %vm1797 = vcmp.eq.f32.partialorder %v1796, 8.507059e+37
        %v1798 = vand.u32 %v1779, 2147483648
        %v1799 = vor.u32 1.1754944e-38, %v1798
        %v1800 = vsel %vm1797, %v1799, %v1795
        %v1801 = vmul.f32 1.0, %v1800
        %v1802 = vrcp.pop %v1780
        %v1803 = vmul.f32 %v1780, %v1802
        %v1804 = vsub.f32 1.0, %v1803
        %v1805 = vmul.f32 %v1802, %v1804
        %v1806 = vadd.f32 %v1802, %v1805
        %vm1807 = vweird.f32 %v1780
        %vm1808 = vweird.f32 %v1802
        %vm1809 = vmor %vm1807, %vm1808
        %v1810 = vsel %vm1809, %v1802, %v1806
        %v1811 = vand.u32 2147483647, %v1780
        %vm1812 = vcmp.eq.f32.partialorder %v1811, 8.507059e+37
        %v1813 = vand.u32 %v1780, 2147483648
        %v1814 = vor.u32 1.1754944e-38, %v1813
        %v1815 = vsel %vm1812, %v1814, %v1810
        %v1816 = vmul.f32 1.0, %v1815
        %v1817 = vrcp.pop %v1781
        %v1818 = vmul.f32 %v1781, %v1817
        %v1819 = vsub.f32 1.0, %v1818
        %v1820 = vmul.f32 %v1817, %v1819
        %v1821 = vadd.f32 %v1817, %v1820
        %vm1822 = vweird.f32 %v1781
        %vm1823 = vweird.f32 %v1817
        %vm1824 = vmor %vm1822, %vm1823
        %v1825 = vsel %vm1824, %v1817, %v1821
        %v1826 = vand.u32 2147483647, %v1781
        %vm1827 = vcmp.eq.f32.partialorder %v1826, 8.507059e+37
        %v1828 = vand.u32 %v1781, 2147483648
        %v1829 = vor.u32 1.1754944e-38, %v1828
        %v1830 = vsel %vm1827, %v1829, %v1825
        %v1831 = vmul.f32 1.0, %v1830
        %v1832 = vrcp.pop %v1782
        %v1833 = vmul.f32 %v1782, %v1832
        %v1834 = vsub.f32 1.0, %v1833
        %v1835 = vmul.f32 %v1832, %v1834
        %v1836 = vadd.f32 %v1832, %v1835
        %vm1837 = vweird.f32 %v1782
        %vm1838 = vweird.f32 %v1832
        %vm1839 = vmor %vm1837, %vm1838
        %v1840 = vsel %vm1839, %v1832, %v1836
        %v1841 = vand.u32 2147483647, %v1782
        %vm1842 = vcmp.eq.f32.partialorder %v1841, 8.507059e+37
        %v1843 = vand.u32 %v1782, 2147483648
        %v1844 = vor.u32 1.1754944e-38, %v1843
        %v1845 = vsel %vm1842, %v1844, %v1840
        %v1846 = vmul.f32 1.0, %v1845
        %v1847 = vrcp.pop %v1783
        %v1848 = vmul.f32 %v1783, %v1847
        %v1849 = vsub.f32 1.0, %v1848
        %v1850 = vmul.f32 %v1847, %v1849
        %v1851 = vadd.f32 %v1847, %v1850
        %vm1852 = vweird.f32 %v1783
        %vm1853 = vweird.f32 %v1847
        %vm1854 = vmor %vm1852, %vm1853
        %v1855 = vsel %vm1854, %v1847, %v1851
        %v1856 = vand.u32 2147483647, %v1783
        %vm1857 = vcmp.eq.f32.partialorder %v1856, 8.507059e+37
        %v1858 = vand.u32 %v1783, 2147483648
        %v1859 = vor.u32 1.1754944e-38, %v1858
        %v1860 = vsel %vm1857, %v1859, %v1855
        %v1861 = vmul.f32 1.0, %v1860
        %v1862 = vrcp.pop %v1784
        %v1863 = vmul.f32 %v1784, %v1862
        %v1864 = vsub.f32 1.0, %v1863
        %v1865 = vmul.f32 %v1862, %v1864
        %v1866 = vadd.f32 %v1862, %v1865
        %vm1867 = vweird.f32 %v1784
        %vm1868 = vweird.f32 %v1862
        %vm1869 = vmor %vm1867, %vm1868
        %v1870 = vsel %vm1869, %v1862, %v1866
        %v1871 = vand.u32 2147483647, %v1784
        %vm1872 = vcmp.eq.f32.partialorder %v1871, 8.507059e+37
        %v1873 = vand.u32 %v1784, 2147483648
        %v1874 = vor.u32 1.1754944e-38, %v1873
        %v1875 = vsel %vm1872, %v1874, %v1870
        %v1876 = vmul.f32 1.0, %v1875
        %v1877 = vrcp.pop %v1785
        %v1878 = vmul.f32 %v1785, %v1877
        %v1879 = vsub.f32 1.0, %v1878
        %v1880 = vmul.f32 %v1877, %v1879
        %v1881 = vadd.f32 %v1877, %v1880
        %vm1882 = vweird.f32 %v1785
        %vm1883 = vweird.f32 %v1877
        %vm1884 = vmor %vm1882, %vm1883
        %v1885 = vsel %vm1884, %v1877, %v1881
        %v1886 = vand.u32 2147483647, %v1785
        %vm1887 = vcmp.eq.f32.partialorder %v1886, 8.507059e+37
        %v1888 = vand.u32 %v1785, 2147483648
        %v1889 = vor.u32 1.1754944e-38, %v1888
        %v1890 = vsel %vm1887, %v1889, %v1885
        %v1891 = vmul.f32 1.0, %v1890
        %v1892 = vrcp.pop %v1786
        %v1893 = vmul.f32 %v1786, %v1892
        %v1894 = vsub.f32 1.0, %v1893
        %v1895 = vmul.f32 %v1892, %v1894
        %v1896 = vadd.f32 %v1892, %v1895
        %vm1897 = vweird.f32 %v1786
        %vm1898 = vweird.f32 %v1892
        %vm1899 = vmor %vm1897, %vm1898
        %v1900 = vsel %vm1899, %v1892, %v1896
        %v1901 = vand.u32 2147483647, %v1786
        %vm1902 = vcmp.eq.f32.partialorder %v1901, 8.507059e+37
        %v1903 = vand.u32 %v1786, 2147483648
        %v1904 = vor.u32 1.1754944e-38, %v1903
        %v1905 = vsel %vm1902, %v1904, %v1900
        %v1906 = vmul.f32 1.0, %v1905
        %v1915 = vrot.slane %v1816, 7
        %v1916 = vrot.slane %v1846, 7
        %v1917 = vrot.slane %v1876, 7
        %v1918 = vrot.slane %v1906, 7
        %vm1919 = vcmask 1040384
        %v1920 = vsel %vm1919, %v1801, %v1915
        %v1921 = vsel %vm1368, %v1801, %v1915
        %v1922 = vrot.slane %v1921, 1
        %v1923 = vsel %vm1370, %v1801, %v1915
        %v1924 = vrot.slane %v1923, 2
        %v1925 = vsel %vm1372, %v1801, %v1915
        %v1926 = vrot.slane %v1925, 3
        %v1927 = vsel %vm1374, %v1801, %v1915
        %v1928 = vrot.slane %v1927, 4
        %v1929 = vsel %vm1376, %v1801, %v1915
        %v1930 = vrot.slane %v1929, 5
        %v1931 = vsel %vm1378, %v1801, %v1915
        %v1932 = vrot.slane %v1931, 6
        %vm1933 = vcmask 1046528
        %v1934 = vsel %vm1933, %v1915, %v1801
        %v1935 = vrot.slane %v1934, 7
        %v1936 = vsel %vm1919, %v1831, %v1916
        %v1937 = vsel %vm1368, %v1831, %v1916
        %v1938 = vrot.slane %v1937, 1
        %v1939 = vsel %vm1370, %v1831, %v1916
        %v1940 = vrot.slane %v1939, 2
        %v1941 = vsel %vm1372, %v1831, %v1916
        %v1942 = vrot.slane %v1941, 3
        %v1943 = vsel %vm1374, %v1831, %v1916
        %v1944 = vrot.slane %v1943, 4
        %v1945 = vsel %vm1376, %v1831, %v1916
        %v1946 = vrot.slane %v1945, 5
        %v1947 = vsel %vm1378, %v1831, %v1916
        %v1948 = vrot.slane %v1947, 6
        %v1949 = vsel %vm1933, %v1916, %v1831
        %v1950 = vrot.slane %v1949, 7
        %v1951 = vsel %vm1919, %v1861, %v1917
        %v1952 = vsel %vm1368, %v1861, %v1917
        %v1953 = vrot.slane %v1952, 1
        %v1954 = vsel %vm1370, %v1861, %v1917
        %v1955 = vrot.slane %v1954, 2
        %v1956 = vsel %vm1372, %v1861, %v1917
        %v1957 = vrot.slane %v1956, 3
        %v1958 = vsel %vm1374, %v1861, %v1917
        %v1959 = vrot.slane %v1958, 4
        %v1960 = vsel %vm1376, %v1861, %v1917
        %v1961 = vrot.slane %v1960, 5
        %v1962 = vsel %vm1378, %v1861, %v1917
        %v1963 = vrot.slane %v1962, 6
        %v1964 = vsel %vm1933, %v1917, %v1861
        %v1965 = vrot.slane %v1964, 7
        %v1966 = vsel %vm1919, %v1891, %v1918
        %v1967 = vsel %vm1368, %v1891, %v1918
        %v1968 = vrot.slane %v1967, 1
        %v1969 = vsel %vm1370, %v1891, %v1918
        %v1970 = vrot.slane %v1969, 2
        %v1971 = vsel %vm1372, %v1891, %v1918
        %v1972 = vrot.slane %v1971, 3
        %v1973 = vsel %vm1374, %v1891, %v1918
        %v1974 = vrot.slane %v1973, 4
        %v1975 = vsel %vm1376, %v1891, %v1918
        %v1976 = vrot.slane %v1975, 5
        %v1977 = vsel %vm1378, %v1891, %v1918
        %v1978 = vrot.slane %v1977, 6
        %v1979 = vsel %vm1933, %v1918, %v1891
        %v1980 = vrot.slane %v1979, 7
        %v1981 = vperm.slane %v1920, 0
        %v1982 = vperm.slane %v1920, 1
        %v1983 = vperm.slane %v1922, 0
        %v1984 = vperm.slane %v1922, 1
        %v1985 = vperm.slane %v1924, 0
        %v1986 = vperm.slane %v1924, 1
        %v1987 = vperm.slane %v1926, 0
        %v1988 = vperm.slane %v1926, 1
        %v1989 = vperm.slane %v1928, 0
        %v1990 = vperm.slane %v1928, 1
        %v1991 = vperm.slane %v1930, 0
        %v1992 = vperm.slane %v1930, 1
        %v1993 = vperm.slane %v1932, 0
        %v1994 = vperm.slane %v1932, 1
        %v1995 = vperm.slane %v1935, 0
        %v1996 = vperm.slane %v1935, 1
        %v1997 = vperm.slane %v1936, 0
        %v1998 = vperm.slane %v1936, 1
        %v1999 = vperm.slane %v1938, 0
        %v2000 = vperm.slane %v1938, 1
        %v2001 = vperm.slane %v1940, 0
        %v2002 = vperm.slane %v1940, 1
        %v2003 = vperm.slane %v1942, 0
        %v2004 = vperm.slane %v1942, 1
        %v2005 = vperm.slane %v1944, 0
        %v2006 = vperm.slane %v1944, 1
        %v2007 = vperm.slane %v1946, 0
        %v2008 = vperm.slane %v1946, 1
        %v2009 = vperm.slane %v1948, 0
        %v2010 = vperm.slane %v1948, 1
        %v2011 = vperm.slane %v1950, 0
        %v2012 = vperm.slane %v1950, 1
        %v2013 = vperm.slane %v1951, 0
        %v2014 = vperm.slane %v1951, 1
        %v2015 = vperm.slane %v1953, 0
        %v2016 = vperm.slane %v1953, 1
        %v2017 = vperm.slane %v1955, 0
        %v2018 = vperm.slane %v1955, 1
        %v2019 = vperm.slane %v1957, 0
        %v2020 = vperm.slane %v1957, 1
        %v2021 = vperm.slane %v1959, 0
        %v2022 = vperm.slane %v1959, 1
        %v2023 = vperm.slane %v1961, 0
        %v2024 = vperm.slane %v1961, 1
        %v2025 = vperm.slane %v1963, 0
        %v2026 = vperm.slane %v1963, 1
        %v2027 = vperm.slane %v1965, 0
        %v2028 = vperm.slane %v1965, 1
        %v2029 = vperm.slane %v1966, 0
        %v2030 = vperm.slane %v1966, 1
        %v2031 = vperm.slane %v1968, 0
        %v2032 = vperm.slane %v1968, 1
        %v2033 = vperm.slane %v1970, 0
        %v2034 = vperm.slane %v1970, 1
        %v2035 = vperm.slane %v1972, 0
        %v2036 = vperm.slane %v1972, 1
        %v2037 = vperm.slane %v1974, 0
        %v2038 = vperm.slane %v1974, 1
        %v2039 = vperm.slane %v1976, 0
        %v2040 = vperm.slane %v1976, 1
        %v2041 = vperm.slane %v1978, 0
        %v2042 = vperm.slane %v1978, 1
        %v2043 = vperm.slane %v1980, 0
        %v2044 = vperm.slane %v1980, 1
        %v2109 = vmul.f32 %v1981, %v216
        %v2110 = vmul.f32 %v1982, %v217
        %v2111 = vmul.f32 %v1981, %v218
        %v2112 = vmul.f32 %v1982, %v219
        %v2113 = vmul.f32 %v1983, %v220
        %v2114 = vmul.f32 %v1984, %v221
        %v2115 = vmul.f32 %v1983, %v222
        %v2116 = vmul.f32 %v1984, %v223
        %v2117 = vmul.f32 %v1985, %v224
        %v2118 = vmul.f32 %v1986, %v225
        %v2119 = vmul.f32 %v1985, %v226
        %v2120 = vmul.f32 %v1986, %v227
        %v2121 = vmul.f32 %v1987, %v228
        %v2122 = vmul.f32 %v1988, %v229
        %v2123 = vmul.f32 %v1987, %v230
        %v2124 = vmul.f32 %v1988, %v231
        %v2125 = vmul.f32 %v1989, %v232
        %v2126 = vmul.f32 %v1990, %v233
        %v2127 = vmul.f32 %v1989, %v234
        %v2128 = vmul.f32 %v1990, %v235
        %v2129 = vmul.f32 %v1991, %v236
        %v2130 = vmul.f32 %v1992, %v237
        %v2131 = vmul.f32 %v1991, %v238
        %v2132 = vmul.f32 %v1992, %v239
        %v2133 = vmul.f32 %v1993, %v240
        %v2134 = vmul.f32 %v1994, %v241
        %v2135 = vmul.f32 %v1993, %v242
        %v2136 = vmul.f32 %v1994, %v243
        %v2137 = vmul.f32 %v1995, %v244
        %v2138 = vmul.f32 %v1996, %v245
        %v2139 = vmul.f32 %v1995, %v246
        %v2140 = vmul.f32 %v1996, %v247
        %v2141 = vmul.f32 %v1997, %v248
        %v2142 = vmul.f32 %v1998, %v249
        %v2143 = vmul.f32 %v1997, %v250
        %v2144 = vmul.f32 %v1998, %v251
        %v2145 = vmul.f32 %v1999, %v252
        %v2146 = vmul.f32 %v2000, %v253
        %v2147 = vmul.f32 %v1999, %v254
        %v2148 = vmul.f32 %v2000, %v255
        %v2149 = vmul.f32 %v2001, %v256
        %v2150 = vmul.f32 %v2002, %v257
        %v2151 = vmul.f32 %v2001, %v258
        %v2152 = vmul.f32 %v2002, %v259
        %v2153 = vmul.f32 %v2003, %v260
        %v2154 = vmul.f32 %v2004, %v261
        %v2155 = vmul.f32 %v2003, %v262
        %v2156 = vmul.f32 %v2004, %v263
        %v2157 = vmul.f32 %v2005, %v264
        %v2158 = vmul.f32 %v2006, %v265
        %v2159 = vmul.f32 %v2005, %v266
        %v2160 = vmul.f32 %v2006, %v267
        %v2161 = vmul.f32 %v2007, %v268
        %v2162 = vmul.f32 %v2008, %v269
        %v2163 = vmul.f32 %v2007, %v270
        %v2164 = vmul.f32 %v2008, %v271
        %v2165 = vmul.f32 %v2009, %v272
        %v2166 = vmul.f32 %v2010, %v273
        %v2167 = vmul.f32 %v2009, %v274
        %v2168 = vmul.f32 %v2010, %v275
        %v2169 = vmul.f32 %v2011, %v276
        %v2170 = vmul.f32 %v2012, %v277
        %v2171 = vmul.f32 %v2011, %v278
        %v2172 = vmul.f32 %v2012, %v279
        %v2173 = vmul.f32 %v2013, %v280
        %v2174 = vmul.f32 %v2014, %v281
        %v2175 = vmul.f32 %v2013, %v282
        %v2176 = vmul.f32 %v2014, %v283
        %v2177 = vmul.f32 %v2015, %v284
        %v2178 = vmul.f32 %v2016, %v285
        %v2179 = vmul.f32 %v2015, %v286
        %v2180 = vmul.f32 %v2016, %v287
        %v2181 = vmul.f32 %v2017, %v288
        %v2182 = vmul.f32 %v2018, %v289
        %v2183 = vmul.f32 %v2017, %v290
        %v2184 = vmul.f32 %v2018, %v291
        %v2185 = vmul.f32 %v2019, %v292
        %v2186 = vmul.f32 %v2020, %v293
        %v2187 = vmul.f32 %v2019, %v294
        %v2188 = vmul.f32 %v2020, %v295
        %v2189 = vmul.f32 %v2021, %v296
        %v2190 = vmul.f32 %v2022, %v297
        %v2191 = vmul.f32 %v2021, %v298
        %v2192 = vmul.f32 %v2022, %v299
        %v2193 = vmul.f32 %v2023, %v300
        %v2194 = vmul.f32 %v2024, %v301
        %v2195 = vmul.f32 %v2023, %v302
        %v2196 = vmul.f32 %v2024, %v303
        %v2197 = vmul.f32 %v2025, %v304
        %v2198 = vmul.f32 %v2026, %v305
        %v2199 = vmul.f32 %v2025, %v306
        %v2200 = vmul.f32 %v2026, %v307
        %v2201 = vmul.f32 %v2027, %v308
        %v2202 = vmul.f32 %v2028, %v309
        %v2203 = vmul.f32 %v2027, %v310
        %v2204 = vmul.f32 %v2028, %v311
        %v2205 = vmul.f32 %v2029, %v312
        %v2206 = vmul.f32 %v2030, %v313
        %v2207 = vmul.f32 %v2029, %v314
        %v2208 = vmul.f32 %v2030, %v315
        %v2209 = vmul.f32 %v2031, %v316
        %v2210 = vmul.f32 %v2032, %v317
        %v2211 = vmul.f32 %v2031, %v318
        %v2212 = vmul.f32 %v2032, %v319
        %v2213 = vmul.f32 %v2033, %v320
        %v2214 = vmul.f32 %v2034, %v321
        %v2215 = vmul.f32 %v2033, %v322
        %v2216 = vmul.f32 %v2034, %v323
        %v2217 = vmul.f32 %v2035, %v324
        %v2218 = vmul.f32 %v2036, %v325
        %v2219 = vmul.f32 %v2035, %v326
        %v2220 = vmul.f32 %v2036, %v327
        %v2221 = vmul.f32 %v2037, %v328
        %v2222 = vmul.f32 %v2038, %v329
        %v2223 = vmul.f32 %v2037, %v330
        %v2224 = vmul.f32 %v2038, %v331
        %v2225 = vmul.f32 %v2039, %v332
        %v2226 = vmul.f32 %v2040, %v333
        %v2227 = vmul.f32 %v2039, %v334
        %v2228 = vmul.f32 %v2040, %v335
        %v2229 = vmul.f32 %v2041, %v336
        %v2230 = vmul.f32 %v2042, %v337
        %v2231 = vmul.f32 %v2041, %v338
        %v2232 = vmul.f32 %v2042, %v339
        %v2233 = vmul.f32 %v2043, %v340
        %v2234 = vmul.f32 %v2044, %v341
        %v2235 = vmul.f32 %v2043, %v342
        %v2236 = vmul.f32 %v2044, %v343
        %2237 = vst [vmem:[%s208] sm:$0xff] %v2109
        %2238 = vst [vmem:[%s208 + $0x8] sm:$0xff] %v2110
        %2239 = vst [vmem:[%s208 + $0x10] sm:$0xff] %v2111
        %2240 = vst [vmem:[%s208 + $0x18] sm:$0xff] %v2112
        %2241 = vst [vmem:[%s208 + $0x20] sm:$0xff] %v2113
        %2242 = vst [vmem:[%s208 + $0x28] sm:$0xff] %v2114
        %2243 = vst [vmem:[%s208 + $0x30] sm:$0xff] %v2115
        %2244 = vst [vmem:[%s208 + $0x38] sm:$0xff] %v2116
        %2245 = vst [vmem:[%s208 + $0x40] sm:$0xff] %v2117
        %2246 = vst [vmem:[%s208 + $0x48] sm:$0xff] %v2118
        %2247 = vst [vmem:[%s208 + $0x50] sm:$0xff] %v2119
        %2248 = vst [vmem:[%s208 + $0x58] sm:$0xff] %v2120
        %2249 = vst [vmem:[%s208 + $0x60] sm:$0xff] %v2121
        %2250 = vst [vmem:[%s208 + $0x68] sm:$0xff] %v2122
        %2251 = vst [vmem:[%s208 + $0x70] sm:$0xff] %v2123
        %2252 = vst [vmem:[%s208 + $0x78] sm:$0xff] %v2124
        %2253 = vst [vmem:[%s208 + $0x80] sm:$0xff] %v2125
        %2254 = vst [vmem:[%s208 + $0x88] sm:$0xff] %v2126
        %2255 = vst [vmem:[%s208 + $0x90] sm:$0xff] %v2127
        %2256 = vst [vmem:[%s208 + $0x98] sm:$0xff] %v2128
        %2257 = vst [vmem:[%s208 + $0xa0] sm:$0xff] %v2129
        %2258 = vst [vmem:[%s208 + $0xa8] sm:$0xff] %v2130
        %2259 = vst [vmem:[%s208 + $0xb0] sm:$0xff] %v2131
        %2260 = vst [vmem:[%s208 + $0xb8] sm:$0xff] %v2132
        %2261 = vst [vmem:[%s208 + $0xc0] sm:$0xff] %v2133
        %2262 = vst [vmem:[%s208 + $0xc8] sm:$0xff] %v2134
        %2263 = vst [vmem:[%s208 + $0xd0] sm:$0xff] %v2135
        %2264 = vst [vmem:[%s208 + $0xd8] sm:$0xff] %v2136
        %2265 = vst [vmem:[%s208 + $0xe0] sm:$0xff] %v2137
        %2266 = vst [vmem:[%s208 + $0xe8] sm:$0xff] %v2138
        %2267 = vst [vmem:[%s208 + $0xf0] sm:$0xff] %v2139
        %2268 = vst [vmem:[%s208 + $0xf8] sm:$0xff] %v2140
        %2269 = vst [vmem:[%s208 + $0x100] sm:$0xff] %v2141
        %2270 = vst [vmem:[%s208 + $0x108] sm:$0xff] %v2142
        %2271 = vst [vmem:[%s208 + $0x110] sm:$0xff] %v2143
        %2272 = vst [vmem:[%s208 + $0x118] sm:$0xff] %v2144
        %2273 = vst [vmem:[%s208 + $0x120] sm:$0xff] %v2145
        %2274 = vst [vmem:[%s208 + $0x128] sm:$0xff] %v2146
        %2275 = vst [vmem:[%s208 + $0x130] sm:$0xff] %v2147
        %2276 = vst [vmem:[%s208 + $0x138] sm:$0xff] %v2148
        %2277 = vst [vmem:[%s208 + $0x140] sm:$0xff] %v2149
        %2278 = vst [vmem:[%s208 + $0x148] sm:$0xff] %v2150
        %2279 = vst [vmem:[%s208 + $0x150] sm:$0xff] %v2151
        %2280 = vst [vmem:[%s208 + $0x158] sm:$0xff] %v2152
        %2281 = vst [vmem:[%s208 + $0x160] sm:$0xff] %v2153
        %2282 = vst [vmem:[%s208 + $0x168] sm:$0xff] %v2154
        %2283 = vst [vmem:[%s208 + $0x170] sm:$0xff] %v2155
        %2284 = vst [vmem:[%s208 + $0x178] sm:$0xff] %v2156
        %2285 = vst [vmem:[%s208 + $0x180] sm:$0xff] %v2157
        %2286 = vst [vmem:[%s208 + $0x188] sm:$0xff] %v2158
        %2287 = vst [vmem:[%s208 + $0x190] sm:$0xff] %v2159
        %2288 = vst [vmem:[%s208 + $0x198] sm:$0xff] %v2160
        %2289 = vst [vmem:[%s208 + $0x1a0] sm:$0xff] %v2161
        %2290 = vst [vmem:[%s208 + $0x1a8] sm:$0xff] %v2162
        %2291 = vst [vmem:[%s208 + $0x1b0] sm:$0xff] %v2163
        %2292 = vst [vmem:[%s208 + $0x1b8] sm:$0xff] %v2164
        %2293 = vst [vmem:[%s208 + $0x1c0] sm:$0xff] %v2165
        %2294 = vst [vmem:[%s208 + $0x1c8] sm:$0xff] %v2166
        %2295 = vst [vmem:[%s208 + $0x1d0] sm:$0xff] %v2167
        %2296 = vst [vmem:[%s208 + $0x1d8] sm:$0xff] %v2168
        %2297 = vst [vmem:[%s208 + $0x1e0] sm:$0xff] %v2169
        %2298 = vst [vmem:[%s208 + $0x1e8] sm:$0xff] %v2170
        %2299 = vst [vmem:[%s208 + $0x1f0] sm:$0xff] %v2171
        %2300 = vst [vmem:[%s208 + $0x1f8] sm:$0xff] %v2172
        %2301 = vst [vmem:[%s208 + $0x200] sm:$0xff] %v2173
        %2302 = vst [vmem:[%s208 + $0x208] sm:$0xff] %v2174
        %2303 = vst [vmem:[%s208 + $0x210] sm:$0xff] %v2175
        %2304 = vst [vmem:[%s208 + $0x218] sm:$0xff] %v2176
        %2305 = vst [vmem:[%s208 + $0x220] sm:$0xff] %v2177
        %2306 = vst [vmem:[%s208 + $0x228] sm:$0xff] %v2178
        %2307 = vst [vmem:[%s208 + $0x230] sm:$0xff] %v2179
        %2308 = vst [vmem:[%s208 + $0x238] sm:$0xff] %v2180
        %2309 = vst [vmem:[%s208 + $0x240] sm:$0xff] %v2181
        %2310 = vst [vmem:[%s208 + $0x248] sm:$0xff] %v2182
        %2311 = vst [vmem:[%s208 + $0x250] sm:$0xff] %v2183
        %2312 = vst [vmem:[%s208 + $0x258] sm:$0xff] %v2184
        %2313 = vst [vmem:[%s208 + $0x260] sm:$0xff] %v2185
        %2314 = vst [vmem:[%s208 + $0x268] sm:$0xff] %v2186
        %2315 = vst [vmem:[%s208 + $0x270] sm:$0xff] %v2187
        %2316 = vst [vmem:[%s208 + $0x278] sm:$0xff] %v2188
        %2317 = vst [vmem:[%s208 + $0x280] sm:$0xff] %v2189
        %2318 = vst [vmem:[%s208 + $0x288] sm:$0xff] %v2190
        %2319 = vst [vmem:[%s208 + $0x290] sm:$0xff] %v2191
        %2320 = vst [vmem:[%s208 + $0x298] sm:$0xff] %v2192
        %2321 = vst [vmem:[%s208 + $0x2a0] sm:$0xff] %v2193
        %2322 = vst [vmem:[%s208 + $0x2a8] sm:$0xff] %v2194
        %2323 = vst [vmem:[%s208 + $0x2b0] sm:$0xff] %v2195
        %2324 = vst [vmem:[%s208 + $0x2b8] sm:$0xff] %v2196
        %2325 = vst [vmem:[%s208 + $0x2c0] sm:$0xff] %v2197
        %2326 = vst [vmem:[%s208 + $0x2c8] sm:$0xff] %v2198
        %2327 = vst [vmem:[%s208 + $0x2d0] sm:$0xff] %v2199
        %2328 = vst [vmem:[%s208 + $0x2d8] sm:$0xff] %v2200
        %2329 = vst [vmem:[%s208 + $0x2e0] sm:$0xff] %v2201
        %2330 = vst [vmem:[%s208 + $0x2e8] sm:$0xff] %v2202
        %2331 = vst [vmem:[%s208 + $0x2f0] sm:$0xff] %v2203
        %2332 = vst [vmem:[%s208 + $0x2f8] sm:$0xff] %v2204
        %2333 = vst [vmem:[%s208 + $0x300] sm:$0xff] %v2205
        %2334 = vst [vmem:[%s208 + $0x308] sm:$0xff] %v2206
        %2335 = vst [vmem:[%s208 + $0x310] sm:$0xff] %v2207
        %2336 = vst [vmem:[%s208 + $0x318] sm:$0xff] %v2208
        %2337 = vst [vmem:[%s208 + $0x320] sm:$0xff] %v2209
        %2338 = vst [vmem:[%s208 + $0x328] sm:$0xff] %v2210
        %2339 = vst [vmem:[%s208 + $0x330] sm:$0xff] %v2211
        %2340 = vst [vmem:[%s208 + $0x338] sm:$0xff] %v2212
        %2341 = vst [vmem:[%s208 + $0x340] sm:$0xff] %v2213
        %2342 = vst [vmem:[%s208 + $0x348] sm:$0xff] %v2214
        %2343 = vst [vmem:[%s208 + $0x350] sm:$0xff] %v2215
        %2344 = vst [vmem:[%s208 + $0x358] sm:$0xff] %v2216
        %2345 = vst [vmem:[%s208 + $0x360] sm:$0xff] %v2217
        %2346 = vst [vmem:[%s208 + $0x368] sm:$0xff] %v2218
        %2347 = vst [vmem:[%s208 + $0x370] sm:$0xff] %v2219
        %2348 = vst [vmem:[%s208 + $0x378] sm:$0xff] %v2220
        %2349 = vst [vmem:[%s208 + $0x380] sm:$0xff] %v2221
        %2350 = vst [vmem:[%s208 + $0x388] sm:$0xff] %v2222
        %2351 = vst [vmem:[%s208 + $0x390] sm:$0xff] %v2223
        %2352 = vst [vmem:[%s208 + $0x398] sm:$0xff] %v2224
        %2353 = vst [vmem:[%s208 + $0x3a0] sm:$0xff] %v2225
        %2354 = vst [vmem:[%s208 + $0x3a8] sm:$0xff] %v2226
        %2355 = vst [vmem:[%s208 + $0x3b0] sm:$0xff] %v2227
        %2356 = vst [vmem:[%s208 + $0x3b8] sm:$0xff] %v2228
        %2357 = vst [vmem:[%s208 + $0x3c0] sm:$0xff] %v2229
        %2358 = vst [vmem:[%s208 + $0x3c8] sm:$0xff] %v2230
        %2359 = vst [vmem:[%s208 + $0x3d0] sm:$0xff] %v2231
        %2360 = vst [vmem:[%s208 + $0x3d8] sm:$0xff] %v2232
        %2361 = vst [vmem:[%s208 + $0x3e0] sm:$0xff] %v2233
        %2362 = vst [vmem:[%s208 + $0x3e8] sm:$0xff] %v2234
        %2363 = vst [vmem:[%s208 + $0x3f0] sm:$0xff] %v2235
        %2364 = vst [vmem:[%s208 + $0x3f8] sm:$0xff] %v2236
        %s2365 = sand.u32 %s112, 1
        %s2366 = scalar_lea.sflag [#allocation4], %s2365
        %s2367 = sand.u32 %s112, 1
        %s2368 = smul.addr %s2367, 1024
        %s2369 = scalar_lea.vmem [#allocation5], %s2368
        // Predicated region
        $region37: #{tpu_custom_call.1} parent=31 // pred_check
          %p2370 = pneg %p122
        $region38: #{tpu_custom_call.1} parent=31 // pred_check_branch
          %2372 = sbr.rel (%p2370) target = $region40
        $region39: #{tpu_custom_call.1} parent=31 // pred_region
          %s2373 = smul.u32 2, %s25
          %2375 = vsyncadd %s2366, 0
          %s2376 = smul.addr %s24, 128
          %s2377 = sadd.s32 %s2373, %s2376
          %s2378 = smul.addr %s2377, 8
          %s2379 = scalar_lea.hbm %s3, %s2378
          %s2380 = sshll.u32 %s2369, 4
          %s2381 = int_to_ptr.vmem [resolvable:$true] %s2380
          %s2382 = sshll.u32 %s2379, 4
          %s2383 = int_to_ptr.hbm [resolvable:$true] %s2382
          %2388 = dma.vmem_to_hbm [thread:$0]  %s2381, 16384, %s2383, %s2366, 256, 256, 16
        $region40: #{tpu_custom_call.1} parent=31 // pred_fallthru
          _
      $region32: #{tpu_custom_call.1} parent=5 // pred_fallthru
        _
      %p2389 = scmp.le.s32.totalorder 2, %s15
      // Predicated region
      $region41: #{tpu_custom_call.1} parent=5 // pred_check
        %p2390 = pneg %p2389
      $region42: #{tpu_custom_call.1} parent=5 // pred_check_branch
        %2392 = sbr.rel (%p2390) target = $region44
      $region43: #{tpu_custom_call.1} parent=5 // pred_region
        %s2393 = ssub.s32 %s15, 2
        // Predicated region
        $region45: #{tpu_custom_call.1} parent=43 // pred_check
          %p2394 = pneg %p128
        $region46: #{tpu_custom_call.1} parent=43 // pred_check_branch
          %2396 = sbr.rel (%p2394) target = $region48
        $region47: #{tpu_custom_call.1} parent=43 // pred_region
          %s2397 = sand.u32 %s113, 1
          %s2398 = scalar_lea.sflag [#allocation4], %s2397
          %s2399 = sand.u32 %s113, 1
          %s2400 = smul.addr %s2399, 1024
          %s2401 = scalar_lea.vmem [#allocation5], %s2400
          %2403 = dma.done %s2398, 16384
        $region48: #{tpu_custom_call.1} parent=43 // pred_fallthru
          _
      $region44: #{tpu_custom_call.1} parent=5 // pred_fallthru
        _
    $region6: #{tpu_custom_call.1} parent=1 // loop_footer
      %s19 = sadd.s32 1, %s15
    $region7: #{tpu_custom_call.1} parent=1 // loop_footer_branch
      %14 = sbr.rel target = $region3
    $region8: #{tpu_custom_call.1} parent=1 // loop_exit
      _
    %2404 = vsyncpa [#allocation3], 1
    %s2405 = scalar_lea.sflag [#allocation3], 1
    %2406 = vsyncpa %s2405, 1
    %2407 = vsyncpa [#allocation4], 1
    %s2408 = scalar_lea.sflag [#allocation4], 1
    %2409 = vsyncpa %s2408, 1

</llo_original>
